<compile_context>
chip_gen: v5e
topology: v5e:2x2
jax: 0.10.0
libtpu: 0.0.40
codegen_flags: <defaults>
</compile_context>

<pallas_src>
import math
import functools

import jax
import jax.numpy as jnp
from jax import lax
from jax.experimental import pallas as pl
from jax.experimental.pallas import tpu as pltpu


def _mqa_kernel(xq_ref, xkv_ref, wq_ref, bq_ref, wk_ref, bk_ref, wv_ref,
                bv_ref, wo_ref, bo_ref, o_ref, k_sc, v_sc, q_sc, ctx_sc, *,
                num_heads, head_pad, q_tile, kv_tile, inv_sqrt_hd):
    """One (batch, query-tile) grid step of multi-query attention.

    xq_ref : (1, TQ, D) bf16 -- query slice of x
    xkv_ref: (1, S, D)  bf16 -- full-sequence x (only read when t == 0)
    weights: bf16 (head-padded); biases: f32 (head-padded); resident in VMEM
    o_ref  : (1, TQ, D) f32
    scratch: k_sc/v_sc (S, HP) bf16 per-batch K/V cache (carried across t),
             q_sc (H*TQ, HP) bf16 head-split q, ctx_sc (TQ, H*HP) bf16 merged ctx
    """
    H, TQ, HP, TK = num_heads, q_tile, head_pad, kv_tile

    # --- K/V projections: once per batch, cached in bf16 scratch across t. ---
    @pl.when(pl.program_id(1) == 0)
    def _():
        xkv = xkv_ref[0]                                               # (S, D)
        k = jnp.dot(xkv, wk_ref[...], preferred_element_type=jnp.float32) + bk_ref[...]
        v = jnp.dot(xkv, wv_ref[...], preferred_element_type=jnp.float32) + bv_ref[...]
        k_sc[...] = k.astype(jnp.bfloat16)
        v_sc[...] = v.astype(jnp.bfloat16)

    # --- Q projection for this tile; fold 1/sqrt(hd) into q once. -----------
    xq = xq_ref[0]                                                     # (TQ, D)
    q = jnp.dot(xq, wq_ref[...], preferred_element_type=jnp.float32) + bq_ref[...]
    q = (q * inv_sqrt_hd).astype(jnp.bfloat16)                         # (TQ, H*HP)

    # Head split into lane-dense bf16 scratch: rows [h*TQ, (h+1)*TQ) = head h.
    # Padded columns are exactly zero (wq/bq are zero-padded per head).
    for h in range(H):
        q_sc[h * TQ:(h + 1) * TQ, :] = q[:, h * HP:(h + 1) * HP]
    q_rows = q_sc[...]                                                 # (H*TQ, HP)

    # --- flash-style online softmax over KV chunks ---------------------------
    n_rows = H * TQ
    m_i = jnp.full((n_rows, 1), -jnp.inf, dtype=jnp.float32)
    l_i = jnp.zeros((n_rows, 1), dtype=jnp.float32)
    acc = jnp.zeros((n_rows, HP), dtype=jnp.float32)
    for c in range(k_sc.shape[0] // TK):
        k_c = k_sc[c * TK:(c + 1) * TK, :]                             # (TK, HP)
        v_c = v_sc[c * TK:(c + 1) * TK, :]
        # Scores for all heads in one MXU contraction (no explicit k.T).
        s = lax.dot_general(q_rows, k_c, (((1,), (1,)), ((), ())),
                            preferred_element_type=jnp.float32)        # (H*TQ, TK)
        m_new = jnp.maximum(m_i, jnp.max(s, axis=-1, keepdims=True))
        alpha = jnp.exp(m_i - m_new)
        p = jnp.exp(s - m_new)
        l_i = alpha * l_i + jnp.sum(p, axis=-1, keepdims=True)
        acc = alpha * acc + jnp.dot(p.astype(jnp.bfloat16), v_c,
                                    preferred_element_type=jnp.float32)
        m_i = m_new
    # Softmax normalization on the EUP slot (approx ok for forward/inference).
    ctx = (acc * pl.reciprocal(l_i, approx=True)).astype(jnp.bfloat16)  # (H*TQ, HP)

    # --- head merge (== transpose(1,2).contiguous().view) into bf16 scratch --
    for h in range(H):
        ctx_sc[:, h * HP:(h + 1) * HP] = ctx[h * TQ:(h + 1) * TQ, :]

    # --- output projection (wo's padded rows are zero -> no contribution) ----
    out = jnp.dot(ctx_sc[...], wo_ref[...],
                  preferred_element_type=jnp.float32) + bo_ref[...]
    o_ref[0] = out.astype(o_ref.dtype)


def _pad_head_cols(w, b, n_heads, hd, hd_pad):
    """Zero-pad each head's column block from hd to hd_pad columns."""
    if hd_pad == hd:
        return w, b
    in_f = w.shape[0]
    w = jnp.pad(w.reshape(in_f, n_heads, hd), ((0, 0), (0, 0), (0, hd_pad - hd)))
    b = jnp.pad(b.reshape(1, n_heads, hd), ((0, 0), (0, 0), (0, hd_pad - hd)))
    return w.reshape(in_f, n_heads * hd_pad), b.reshape(1, n_heads * hd_pad)


def _pad_head_rows(w, n_heads, hd, hd_pad):
    """Zero-pad each head's row block from hd to hd_pad rows."""
    if hd_pad == hd:
        return w
    out_f = w.shape[1]
    w = jnp.pad(w.reshape(n_heads, hd, out_f), ((0, 0), (0, hd_pad - hd), (0, 0)))
    return w.reshape(n_heads * hd_pad, out_f)


def multi_query_attention(x, params, *, num_heads, q_tile=None):
    """x: (B, S, D) float32.  params: dict of pre-transposed weights/biases."""
    B, S, D = x.shape
    assert D % num_heads == 0
    hd = D // num_heads
    # Lane-dense head dim: zero-pad per head to a multiple of 128.
    hd_pad = ((hd + 127) // 128) * 128

    if q_tile is None:
        q_tile = 128 if S % 128 == 0 else S   # TODO(synk): 256 on v6e when VMEM allows
    assert S % q_tile == 0
    n_q_tiles = S // q_tile
    kv_tile = 512 if S % 512 == 0 else S      # online-softmax KV chunk

    # bf16 operands for the MXU; biases and softmax math stay f32.
    xb = x.astype(jnp.bfloat16)
    wq, bq = _pad_head_cols(params["wq"], params["bq"], num_heads, hd, hd_pad)
    wk, bk = _pad_head_cols(params["wk"], params["bk"], 1, hd, hd_pad)
    wv, bv = _pad_head_cols(params["wv"], params["bv"], 1, hd, hd_pad)
    wo = _pad_head_rows(params["wo"], num_heads, hd, hd_pad)
    bo = params["bo"]
    wq, wk, wv, wo = (w.astype(jnp.bfloat16) for w in (wq, wk, wv, wo))

    kernel = functools.partial(
        _mqa_kernel, num_heads=num_heads, head_pad=hd_pad, q_tile=q_tile,
        kv_tile=kv_tile, inv_sqrt_hd=1.0 / math.sqrt(hd))

    # Generation-aware scoped-VMEM limit (headroom under 64 MiB on v7x,
    # up to ~100 MiB on v5e/v6e with their 128 MiB physical VMEM).
    try:
        vmem_cap = pltpu.get_tpu_info().vmem_capacity_bytes
    except Exception:
        vmem_cap = 64 * 1024 * 1024
    vmem_limit = min(int(vmem_cap * 0.85), 100 * 1024 * 1024)

    flops = (2 * B * S * D * num_heads * hd_pad          # q projection
             + 2 * 2 * B * S * D * hd_pad                # k, v projections (once/batch)
             + 2 * 2 * B * num_heads * S * S * hd_pad    # scores + context
             + 2 * B * S * num_heads * hd_pad * D)       # output projection
    bytes_accessed = (2 * 2 * B * S * D                  # bf16 x: q tiles + per-batch kv block
                      + 2 * (wq.size + wk.size + wv.size + wo.size)   # bf16 weights, fetched once
                      + 4 * (bq.size + bk.size + bv.size + bo.size)   # f32 biases
                      + 4 * B * S * D)                   # f32 output

    def build(single_buffer):
        # Constant-index operands: single-buffer them (double-buffering buys
        # no overlap since their block index never changes with t, but doubles
        # their VMEM footprint).
        mode = pl.Buffered(1) if single_buffer else None
        const = lambda a: pl.BlockSpec(a.shape, lambda b, t: (0,) * a.ndim,
                                       pipeline_mode=mode)
        return pl.pallas_call(
            kernel,
            out_shape=jax.ShapeDtypeStruct((B, S, D), x.dtype),
            grid_spec=pltpu.PrefetchScalarGridSpec(
                num_scalar_prefetch=0,
                grid=(B, n_q_tiles),
                in_specs=[
                    pl.BlockSpec((1, q_tile, D), lambda b, t: (b, t, 0)),  # x (queries)
                    pl.BlockSpec((1, S, D), lambda b, t: (b, 0, 0),
                                 pipeline_mode=mode),                      # x (K/V, once/batch)
                    const(wq), const(bq),
                    const(wk), const(bk),
                    const(wv), const(bv),
                    const(wo), const(bo),
                ],
                out_specs=pl.BlockSpec((1, q_tile, D), lambda b, t: (b, t, 0)),
                scratch_shapes=[
                    pltpu.VMEM((S, hd_pad), jnp.bfloat16),                     # K cache
                    pltpu.VMEM((S, hd_pad), jnp.bfloat16),                     # V cache
                    pltpu.VMEM((num_heads * q_tile, hd_pad), jnp.bfloat16),    # head-split q
                    pltpu.VMEM((q_tile, num_heads * hd_pad), jnp.bfloat16),    # merged ctx
                ],
            ),
            # t axis is "arbitrary": the per-batch K/V scratch is carried
            # across query tiles; batch stays "parallel" for megacore.
            compiler_params=pltpu.CompilerParams(
                dimension_semantics=("parallel", "arbitrary"),
                vmem_limit_bytes=vmem_limit),
            cost_estimate=pl.CostEstimate(
                flops=int(flops),
                transcendentals=int(B * num_heads * S * S),
                bytes_accessed=int(bytes_accessed)),
        )

    args = (xb, xb, wq, bq, wk, bk, wv, bv, wo, bo)
    try:
        return build(single_buffer=True)(*args)
    except Exception:
        # pl.Buffered(1) not supported on this jax/libtpu combo -> default buffering.
        return build(single_buffer=False)(*args)


def _init_linear(key, in_f, out_f):
    """Deterministic init mimicking nn.Linear (uniform +-1/sqrt(in)).

    Returns weight already transposed to (in_f, out_f) and bias as (1, out_f).
    """
    kw, kb = jax.random.split(key)
    bound = 1.0 / math.sqrt(in_f)
    w = jax.random.uniform(kw, (in_f, out_f), jnp.float32, -bound, bound)
    b = jax.random.uniform(kb, (1, out_f), jnp.float32, -bound, bound)
    return w, b


def _reference(x, params, num_heads):
    """Pure-JAX f32 reference matching the PyTorch forward (mask=None, no dropout)."""
    B, S, D = x.shape
    hd = D // num_heads
    q = x @ params["wq"] + params["bq"][0]
    k = x @ params["wk"] + params["bk"][0]
    v = x @ params["wv"] + params["bv"][0]
    q = q.reshape(B, S, num_heads, hd).transpose(0, 2, 1, 3)      # (B, H, S, hd)
    k = k.reshape(B, S, 1, hd).transpose(0, 2, 1, 3)              # (B, 1, S, hd)
    v = v.reshape(B, S, 1, hd).transpose(0, 2, 1, 3)              # (B, 1, S, hd)
    scores = jnp.einsum("bhqd,bhkd->bhqk", q,
                        jnp.broadcast_to(k, q.shape)) / math.sqrt(hd)
    prob = jax.nn.softmax(scores, axis=-1)
    out = jnp.einsum("bhqk,bhkd->bhqd", prob, jnp.broadcast_to(v, q.shape))
    out = out.transpose(0, 2, 1, 3).reshape(B, S, D)
    return out @ params["wo"] + params["bo"][0]


if __name__ == "__main__":
    B, S, D, H = 2, 8, 32, 4      # batch, seq, hidden, heads -> head_dims = 8
    hd = D // H

    root = jax.random.PRNGKey(0)
    kx, kq, kk, kv, ko = jax.random.split(root, 5)

    x = jax.random.normal(kx, (B, S, D), jnp.float32)

    wq, bq = _init_linear(kq, D, D)
    wk, bk = _init_linear(kk, D, hd)
    wv, bv = _init_linear(kv, D, hd)
    wo, bo = _init_linear(ko, D, D)
    params = dict(wq=wq, bq=bq, wk=wk, bk=bk, wv=wv, bv=bv, wo=wo, bo=bo)

    out = multi_query_attention(x, params, num_heads=H)
    out = jax.block_until_ready(out)

    ref = _reference(x, params, H)
    assert out.shape == (B, S, D)
    # bf16 MXU operands + approx reciprocal vs. f32 reference -> loose tolerance;
    # real bugs (head order / padding / softmax axis / bias) would be O(0.3+) off.
    assert jnp.allclose(out, ref, atol=5e-2, rtol=5e-2), "mismatch vs reference"

    print("KERNEL_OK")
</pallas_src>

<mosaic_0001>
module attributes {stable_mosaic.version = 11 : i64} {
  func.func @_mqa_kernel(%arg0: i32, %arg1: i32, %arg2: memref<1x8x32xbf16, #tpu.memory_space<vmem>>, %arg3: memref<1x8x32xbf16, #tpu.memory_space<vmem>>, %arg4: memref<32x512xbf16, #tpu.memory_space<vmem>>, %arg5: memref<1x512xf32, #tpu.memory_space<vmem>>, %arg6: memref<32x128xbf16, #tpu.memory_space<vmem>>, %arg7: memref<1x128xf32, #tpu.memory_space<vmem>>, %arg8: memref<32x128xbf16, #tpu.memory_space<vmem>>, %arg9: memref<1x128xf32, #tpu.memory_space<vmem>>, %arg10: memref<512x32xbf16, #tpu.memory_space<vmem>>, %arg11: memref<1x32xf32, #tpu.memory_space<vmem>>, %arg12: memref<1x8x32xf32, #tpu.memory_space<vmem>>, %arg13: memref<8x128xbf16, #tpu.memory_space<vmem>>, %arg14: memref<8x128xbf16, #tpu.memory_space<vmem>>, %arg15: memref<32x128xbf16, #tpu.memory_space<vmem>>, %arg16: memref<8x512xbf16, #tpu.memory_space<vmem>>) attributes {dimension_semantics = [#tpu.dimension_semantics<parallel>, #tpu.dimension_semantics<arbitrary>], iteration_bounds = array<i64: 2, 1>, scalar_prefetch = 0 : i64, scratch_operands = 4 : i64, tpu.core_type = #tpu.core_type<tc>, window_params = [{transform_indices = @transform_0, window_bounds = array<i64: 1, 8, 32>}, {pipeline_mode = #tpu.pipeline_mode<synchronous>, transform_indices = @transform_1, window_bounds = array<i64: 1, 8, 32>}, {pipeline_mode = #tpu.pipeline_mode<synchronous>, transform_indices = @transform_2, window_bounds = array<i64: 32, 512>}, {pipeline_mode = #tpu.pipeline_mode<synchronous>, transform_indices = @transform_3, window_bounds = array<i64: 1, 512>}, {pipeline_mode = #tpu.pipeline_mode<synchronous>, transform_indices = @transform_4, window_bounds = array<i64: 32, 128>}, {pipeline_mode = #tpu.pipeline_mode<synchronous>, transform_indices = @transform_5, window_bounds = array<i64: 1, 128>}, {pipeline_mode = #tpu.pipeline_mode<synchronous>, transform_indices = @transform_6, window_bounds = array<i64: 32, 128>}, {pipeline_mode = #tpu.pipeline_mode<synchronous>, transform_indices = @transform_7, window_bounds = array<i64: 1, 128>}, {pipeline_mode = #tpu.pipeline_mode<synchronous>, transform_indices = @transform_8, window_bounds = array<i64: 512, 32>}, {pipeline_mode = #tpu.pipeline_mode<synchronous>, transform_indices = @transform_9, window_bounds = array<i64: 1, 32>}, {transform_indices = @transform_10, window_bounds = array<i64: 1, 8, 32>}]} {
    %c0_i32 = arith.constant 0 : i32
    %0 = arith.cmpi eq, %arg1, %c0_i32 : i32
    %1 = arith.extui %0 : i1 to i32
    %c0_i32_0 = arith.constant 0 : i32
    %2 = arith.cmpi ne, %1, %c0_i32_0 : i32
    scf.if %2 {
      %c0_41 = arith.constant 0 : index
      %c0_42 = arith.constant 0 : index
      %c0_43 = arith.constant 0 : index
      %66 = vector.load %arg3[%c0_41, %c0_42, %c0_43] : memref<1x8x32xbf16, #tpu.memory_space<vmem>>, vector<1x8x32xbf16>
      %67 = vector.shape_cast %66 : vector<1x8x32xbf16> to vector<8x32xbf16>
      %c0_44 = arith.constant 0 : index
      %c0_45 = arith.constant 0 : index
      %68 = vector.load %arg6[%c0_44, %c0_45] : memref<32x128xbf16, #tpu.memory_space<vmem>>, vector<32x128xbf16>
      %cst_46 = arith.constant dense<0.000000e+00> : vector<8x128xf32>
      %69 = tpu.matmul %67, %68, %cst_46 {dimension_numbers = #tpu.dot_dimension_numbers<[1], [0], [0], [1], [0, 0, 1, 1], [], []>} : vector<8x32xbf16>, vector<32x128xbf16>, vector<8x128xf32> -> vector<8x128xf32>
      %c0_47 = arith.constant 0 : index
      %c0_48 = arith.constant 0 : index
      %70 = vector.load %arg7[%c0_47, %c0_48] : memref<1x128xf32, #tpu.memory_space<vmem>>, vector<1x128xf32>
      %71 = vector.broadcast %70 : vector<1x128xf32> to vector<8x128xf32>
      %72 = arith.addf %69, %71 : vector<8x128xf32>
      %c0_49 = arith.constant 0 : index
      %c0_50 = arith.constant 0 : index
      %73 = vector.load %arg8[%c0_49, %c0_50] : memref<32x128xbf16, #tpu.memory_space<vmem>>, vector<32x128xbf16>
      %cst_51 = arith.constant dense<0.000000e+00> : vector<8x128xf32>
      %74 = tpu.matmul %67, %73, %cst_51 {dimension_numbers = #tpu.dot_dimension_numbers<[1], [0], [0], [1], [0, 0, 1, 1], [], []>} : vector<8x32xbf16>, vector<32x128xbf16>, vector<8x128xf32> -> vector<8x128xf32>
      %c0_52 = arith.constant 0 : index
      %c0_53 = arith.constant 0 : index
      %75 = vector.load %arg9[%c0_52, %c0_53] : memref<1x128xf32, #tpu.memory_space<vmem>>, vector<1x128xf32>
      %76 = vector.broadcast %75 : vector<1x128xf32> to vector<8x128xf32>
      %77 = arith.addf %74, %76 : vector<8x128xf32>
      %78 = arith.truncf %72 : vector<8x128xf32> to vector<8x128xbf16>
      %c0_54 = arith.constant 0 : index
      %c0_55 = arith.constant 0 : index
      %79 = vector.load %arg13[%c0_54, %c0_55] : memref<8x128xbf16, #tpu.memory_space<vmem>>, vector<8x128xbf16>
      tpu.vector_store %arg13[%c0_54, %c0_55], %78 {strides = array<i32>} : memref<8x128xbf16, #tpu.memory_space<vmem>>, vector<8x128xbf16>,
      %80 = arith.truncf %77 : vector<8x128xf32> to vector<8x128xbf16>
      %c0_56 = arith.constant 0 : index
      %c0_57 = arith.constant 0 : index
      %81 = vector.load %arg14[%c0_56, %c0_57] : memref<8x128xbf16, #tpu.memory_space<vmem>>, vector<8x128xbf16>
      tpu.vector_store %arg14[%c0_56, %c0_57], %80 {strides = array<i32>} : memref<8x128xbf16, #tpu.memory_space<vmem>>, vector<8x128xbf16>,
    } else {
    }
    %c0 = arith.constant 0 : index
    %c0_1 = arith.constant 0 : index
    %c0_2 = arith.constant 0 : index
    %3 = vector.load %arg2[%c0, %c0_1, %c0_2] : memref<1x8x32xbf16, #tpu.memory_space<vmem>>, vector<1x8x32xbf16>
    %4 = vector.shape_cast %3 : vector<1x8x32xbf16> to vector<8x32xbf16>
    %c0_3 = arith.constant 0 : index
    %c0_4 = arith.constant 0 : index
    %5 = vector.load %arg4[%c0_3, %c0_4] : memref<32x512xbf16, #tpu.memory_space<vmem>>, vector<32x512xbf16>
    %cst = arith.constant dense<0.000000e+00> : vector<8x512xf32>
    %6 = tpu.matmul %4, %5, %cst {dimension_numbers = #tpu.dot_dimension_numbers<[1], [0], [0], [1], [0, 0, 1, 1], [], []>} : vector<8x32xbf16>, vector<32x512xbf16>, vector<8x512xf32> -> vector<8x512xf32>
    %c0_5 = arith.constant 0 : index
    %c0_6 = arith.constant 0 : index
    %7 = vector.load %arg5[%c0_5, %c0_6] : memref<1x512xf32, #tpu.memory_space<vmem>>, vector<1x512xf32>
    %8 = vector.broadcast %7 : vector<1x512xf32> to vector<8x512xf32>
    %9 = arith.addf %6, %8 : vector<8x512xf32>
    %cst_7 = arith.constant 0.353553385 : f32
    %10 = vector.broadcast %cst_7 : f32 to vector<8x512xf32>
    %11 = arith.mulf %9, %10 : vector<8x512xf32>
    %12 = arith.truncf %11 : vector<8x512xf32> to vector<8x512xbf16>
    %13 = vector.extract_strided_slice %12 {offsets = [0, 0], sizes = [8, 128], strides = [1, 1]} : vector<8x512xbf16> to vector<8x128xbf16>
    %c0_8 = arith.constant 0 : index
    %c0_9 = arith.constant 0 : index
    %14 = vector.load %arg15[%c0_8, %c0_9] : memref<32x128xbf16, #tpu.memory_space<vmem>>, vector<8x128xbf16>
    tpu.vector_store %arg15[%c0_8, %c0_9], %13 {strides = array<i32>} : memref<32x128xbf16, #tpu.memory_space<vmem>>, vector<8x128xbf16>,
    %15 = vector.extract_strided_slice %12 {offsets = [0, 128], sizes = [8, 128], strides = [1, 1]} : vector<8x512xbf16> to vector<8x128xbf16>
    %c8 = arith.constant 8 : index
    %c0_10 = arith.constant 0 : index
    %16 = vector.load %arg15[%c8, %c0_10] : memref<32x128xbf16, #tpu.memory_space<vmem>>, vector<8x128xbf16>
    tpu.vector_store %arg15[%c8, %c0_10], %15 {strides = array<i32>} : memref<32x128xbf16, #tpu.memory_space<vmem>>, vector<8x128xbf16>,
    %17 = vector.extract_strided_slice %12 {offsets = [0, 256], sizes = [8, 128], strides = [1, 1]} : vector<8x512xbf16> to vector<8x128xbf16>
    %c16 = arith.constant 16 : index
    %c0_11 = arith.constant 0 : index
    %18 = vector.load %arg15[%c16, %c0_11] : memref<32x128xbf16, #tpu.memory_space<vmem>>, vector<8x128xbf16>
    tpu.vector_store %arg15[%c16, %c0_11], %17 {strides = array<i32>} : memref<32x128xbf16, #tpu.memory_space<vmem>>, vector<8x128xbf16>,
    %19 = vector.extract_strided_slice %12 {offsets = [0, 384], sizes = [8, 128], strides = [1, 1]} : vector<8x512xbf16> to vector<8x128xbf16>
    %c24 = arith.constant 24 : index
    %c0_12 = arith.constant 0 : index
    %20 = vector.load %arg15[%c24, %c0_12] : memref<32x128xbf16, #tpu.memory_space<vmem>>, vector<8x128xbf16>
    tpu.vector_store %arg15[%c24, %c0_12], %19 {strides = array<i32>} : memref<32x128xbf16, #tpu.memory_space<vmem>>, vector<8x128xbf16>,
    %c0_13 = arith.constant 0 : index
    %c0_14 = arith.constant 0 : index
    %21 = vector.load %arg15[%c0_13, %c0_14] : memref<32x128xbf16, #tpu.memory_space<vmem>>, vector<32x128xbf16>
    %cst_15 = arith.constant 0xFF800000 : f32
    %22 = vector.broadcast %cst_15 : f32 to vector<32x1xf32>
    %cst_16 = arith.constant 0.000000e+00 : f32
    %23 = vector.broadcast %cst_16 : f32 to vector<32x1xf32>
    %cst_17 = arith.constant 0.000000e+00 : f32
    %24 = vector.broadcast %cst_17 : f32 to vector<32x128xf32>
    %c0_18 = arith.constant 0 : index
    %c0_19 = arith.constant 0 : index
    %25 = vector.load %arg13[%c0_18, %c0_19] : memref<8x128xbf16, #tpu.memory_space<vmem>>, vector<8x128xbf16>
    %c0_20 = arith.constant 0 : index
    %c0_21 = arith.constant 0 : index
    %26 = vector.load %arg14[%c0_20, %c0_21] : memref<8x128xbf16, #tpu.memory_space<vmem>>, vector<8x128xbf16>
    %cst_22 = arith.constant dense<0.000000e+00> : vector<32x8xf32>
    %27 = tpu.matmul %21, %25, %cst_22 {dimension_numbers = #tpu.dot_dimension_numbers<[1], [1], [0], [0], [0, 0, 1, 0], [], []>} : vector<32x128xbf16>, vector<8x128xbf16>, vector<32x8xf32> -> vector<32x8xf32>
    %cst_23 = arith.constant dense<0xFF800000> : vector<32xf32>
    %28 = vector.multi_reduction <maximumf>, %27, %cst_23 [1] : vector<32x8xf32> to vector<32xf32>
    %29 = vector.shape_cast %28 : vector<32xf32> to vector<32x1xf32>
    %30 = arith.maximumf %22, %29 : vector<32x1xf32>
    %31 = arith.subf %22, %30 : vector<32x1xf32>
    %32 = math.exp %31 : vector<32x1xf32>
    %33 = vector.broadcast %30 : vector<32x1xf32> to vector<32x8xf32>
    %34 = arith.subf %27, %33 : vector<32x8xf32>
    %35 = math.exp %34 : vector<32x8xf32>
    %36 = arith.mulf %32, %23 : vector<32x1xf32>
    %cst_24 = arith.constant dense<0.000000e+00> : vector<32xf32>
    %37 = vector.multi_reduction <add>, %35, %cst_24 [1] : vector<32x8xf32> to vector<32xf32>
    %38 = vector.shape_cast %37 : vector<32xf32> to vector<32x1xf32>
    %39 = arith.addf %36, %38 : vector<32x1xf32>
    %40 = vector.broadcast %32 : vector<32x1xf32> to vector<32x128xf32>
    %41 = arith.mulf %40, %24 : vector<32x128xf32>
    %42 = arith.truncf %35 : vector<32x8xf32> to vector<32x8xbf16>
    %cst_25 = arith.constant dense<0.000000e+00> : vector<32x128xf32>
    %43 = tpu.matmul %42, %26, %cst_25 {dimension_numbers = #tpu.dot_dimension_numbers<[1], [0], [0], [1], [0, 0, 1, 1], [], []>} : vector<32x8xbf16>, vector<8x128xbf16>, vector<32x128xf32> -> vector<32x128xf32>
    %44 = arith.addf %41, %43 : vector<32x128xf32>
    %45 = tpu.reciprocal %39 {approx = true} : vector<32x1xf32> -> vector<32x1xf32>
    %46 = vector.broadcast %45 : vector<32x1xf32> to vector<32x128xf32>
    %47 = arith.mulf %44, %46 : vector<32x128xf32>
    %48 = arith.truncf %47 : vector<32x128xf32> to vector<32x128xbf16>
    %49 = vector.extract_strided_slice %48 {offsets = [0, 0], sizes = [8, 128], strides = [1, 1]} : vector<32x128xbf16> to vector<8x128xbf16>
    %c0_26 = arith.constant 0 : index
    %c0_27 = arith.constant 0 : index
    %50 = vector.load %arg16[%c0_26, %c0_27] : memref<8x512xbf16, #tpu.memory_space<vmem>>, vector<8x128xbf16>
    tpu.vector_store %arg16[%c0_26, %c0_27], %49 {strides = array<i32>} : memref<8x512xbf16, #tpu.memory_space<vmem>>, vector<8x128xbf16>,
    %51 = vector.extract_strided_slice %48 {offsets = [8, 0], sizes = [8, 128], strides = [1, 1]} : vector<32x128xbf16> to vector<8x128xbf16>
    %c0_28 = arith.constant 0 : index
    %c128 = arith.constant 128 : index
    %52 = vector.load %arg16[%c0_28, %c128] : memref<8x512xbf16, #tpu.memory_space<vmem>>, vector<8x128xbf16>
    tpu.vector_store %arg16[%c0_28, %c128], %51 {strides = array<i32>} : memref<8x512xbf16, #tpu.memory_space<vmem>>, vector<8x128xbf16>,
    %53 = vector.extract_strided_slice %48 {offsets = [16, 0], sizes = [8, 128], strides = [1, 1]} : vector<32x128xbf16> to vector<8x128xbf16>
    %c0_29 = arith.constant 0 : index
    %c256 = arith.constant 256 : index
    %54 = vector.load %arg16[%c0_29, %c256] : memref<8x512xbf16, #tpu.memory_space<vmem>>, vector<8x128xbf16>
    tpu.vector_store %arg16[%c0_29, %c256], %53 {strides = array<i32>} : memref<8x512xbf16, #tpu.memory_space<vmem>>, vector<8x128xbf16>,
    %55 = vector.extract_strided_slice %48 {offsets = [24, 0], sizes = [8, 128], strides = [1, 1]} : vector<32x128xbf16> to vector<8x128xbf16>
    %c0_30 = arith.constant 0 : index
    %c384 = arith.constant 384 : index
    %56 = vector.load %arg16[%c0_30, %c384] : memref<8x512xbf16, #tpu.memory_space<vmem>>, vector<8x128xbf16>
    tpu.vector_store %arg16[%c0_30, %c384], %55 {strides = array<i32>} : memref<8x512xbf16, #tpu.memory_space<vmem>>, vector<8x128xbf16>,
    %c0_31 = arith.constant 0 : index
    %c0_32 = arith.constant 0 : index
    %57 = vector.load %arg16[%c0_31, %c0_32] : memref<8x512xbf16, #tpu.memory_space<vmem>>, vector<8x512xbf16>
    %c0_33 = arith.constant 0 : index
    %c0_34 = arith.constant 0 : index
    %58 = vector.load %arg10[%c0_33, %c0_34] : memref<512x32xbf16, #tpu.memory_space<vmem>>, vector<512x32xbf16>
    %cst_35 = arith.constant dense<0.000000e+00> : vector<8x32xf32>
    %59 = tpu.matmul %57, %58, %cst_35 {dimension_numbers = #tpu.dot_dimension_numbers<[1], [0], [0], [1], [0, 0, 1, 1], [], []>} : vector<8x512xbf16>, vector<512x32xbf16>, vector<8x32xf32> -> vector<8x32xf32>
    %c0_36 = arith.constant 0 : index
    %c0_37 = arith.constant 0 : index
    %60 = vector.load %arg11[%c0_36, %c0_37] : memref<1x32xf32, #tpu.memory_space<vmem>>, vector<1x32xf32>
    %61 = vector.broadcast %60 : vector<1x32xf32> to vector<8x32xf32>
    %62 = arith.addf %59, %61 : vector<8x32xf32>
    %c0_38 = arith.constant 0 : index
    %c0_39 = arith.constant 0 : index
    %c0_40 = arith.constant 0 : index
    %63 = vector.load %arg12[%c0_38, %c0_39, %c0_40] : memref<1x8x32xf32, #tpu.memory_space<vmem>>, vector<1x8x32xf32>
    %64 = vector.shape_cast %63 : vector<1x8x32xf32> to vector<8x32xf32>
    %65 = vector.shape_cast %62 : vector<8x32xf32> to vector<1x8x32xf32>
    tpu.vector_store %arg12[%c0_38, %c0_39, %c0_40], %65 {strides = array<i32>} : memref<1x8x32xf32, #tpu.memory_space<vmem>>, vector<1x8x32xf32>,
    return
  }
  func.func @transform_0(%arg0: i32, %arg1: i32) -> (i32, i32, i32) {
    %c0_i32 = arith.constant 0 : i32
    %c0_i32_0 = arith.constant 0 : i32
    return %arg0, %arg1, %c0_i32 : i32, i32, i32
  }
  func.func @transform_1(%arg0: i32, %arg1: i32) -> (i32, i32, i32) {
    %c0_i32 = arith.constant 0 : i32
    %c0_i32_0 = arith.constant 0 : i32
    %c0_i32_1 = arith.constant 0 : i32
    return %arg0, %c0_i32, %c0_i32_0 : i32, i32, i32
  }
  func.func @transform_2(%arg0: i32, %arg1: i32) -> (i32, i32) {
    %c0_i32 = arith.constant 0 : i32
    %c0_i32_0 = arith.constant 0 : i32
    %c0_i32_1 = arith.constant 0 : i32
    return %c0_i32, %c0_i32_0 : i32, i32
  }
  func.func @transform_3(%arg0: i32, %arg1: i32) -> (i32, i32) {
    %c0_i32 = arith.constant 0 : i32
    %c0_i32_0 = arith.constant 0 : i32
    %c0_i32_1 = arith.constant 0 : i32
    return %c0_i32, %c0_i32_0 : i32, i32
  }
  func.func @transform_4(%arg0: i32, %arg1: i32) -> (i32, i32) {
    %c0_i32 = arith.constant 0 : i32
    %c0_i32_0 = arith.constant 0 : i32
    %c0_i32_1 = arith.constant 0 : i32
    return %c0_i32, %c0_i32_0 : i32, i32
  }
  func.func @transform_5(%arg0: i32, %arg1: i32) -> (i32, i32) {
    %c0_i32 = arith.constant 0 : i32
    %c0_i32_0 = arith.constant 0 : i32
    %c0_i32_1 = arith.constant 0 : i32
    return %c0_i32, %c0_i32_0 : i32, i32
  }
  func.func @transform_6(%arg0: i32, %arg1: i32) -> (i32, i32) {
    %c0_i32 = arith.constant 0 : i32
    %c0_i32_0 = arith.constant 0 : i32
    %c0_i32_1 = arith.constant 0 : i32
    return %c0_i32, %c0_i32_0 : i32, i32
  }
  func.func @transform_7(%arg0: i32, %arg1: i32) -> (i32, i32) {
    %c0_i32 = arith.constant 0 : i32
    %c0_i32_0 = arith.constant 0 : i32
    %c0_i32_1 = arith.constant 0 : i32
    return %c0_i32, %c0_i32_0 : i32, i32
  }
  func.func @transform_8(%arg0: i32, %arg1: i32) -> (i32, i32) {
    %c0_i32 = arith.constant 0 : i32
    %c0_i32_0 = arith.constant 0 : i32
    %c0_i32_1 = arith.constant 0 : i32
    return %c0_i32, %c0_i32_0 : i32, i32
  }
  func.func @transform_9(%arg0: i32, %arg1: i32) -> (i32, i32) {
    %c0_i32 = arith.constant 0 : i32
    %c0_i32_0 = arith.constant 0 : i32
    %c0_i32_1 = arith.constant 0 : i32
    return %c0_i32, %c0_i32_0 : i32, i32
  }
  func.func @transform_10(%arg0: i32, %arg1: i32) -> (i32, i32, i32) {
    %c0_i32 = arith.constant 0 : i32
    %c0_i32_0 = arith.constant 0 : i32
    return %arg0, %arg1, %c0_i32 : i32, i32, i32
  }
}

module attributes {stable_mosaic.version = 11 : i64} {
  func.func @_mqa_kernel(%arg0: i32, %arg1: i32, %arg2: memref<1x8x32xbf16, #tpu.memory_space<vmem>>, %arg3: memref<1x8x32xbf16, #tpu.memory_space<vmem>>, %arg4: memref<32x512xbf16, #tpu.memory_space<vmem>>, %arg5: memref<1x512xf32, #tpu.memory_space<vmem>>, %arg6: memref<32x128xbf16, #tpu.memory_space<vmem>>, %arg7: memref<1x128xf32, #tpu.memory_space<vmem>>, %arg8: memref<32x128xbf16, #tpu.memory_space<vmem>>, %arg9: memref<1x128xf32, #tpu.memory_space<vmem>>, %arg10: memref<512x32xbf16, #tpu.memory_space<vmem>>, %arg11: memref<1x32xf32, #tpu.memory_space<vmem>>, %arg12: memref<1x8x32xf32, #tpu.memory_space<vmem>>, %arg13: memref<8x128xbf16, #tpu.memory_space<vmem>>, %arg14: memref<8x128xbf16, #tpu.memory_space<vmem>>, %arg15: memref<32x128xbf16, #tpu.memory_space<vmem>>, %arg16: memref<8x512xbf16, #tpu.memory_space<vmem>>) attributes {dimension_semantics = [#tpu.dimension_semantics<parallel>, #tpu.dimension_semantics<arbitrary>], iteration_bounds = array<i64: 2, 1>, scalar_prefetch = 0 : i64, scratch_operands = 4 : i64, tpu.core_type = #tpu.core_type<tc>, window_params = [{transform_indices = @transform_0, window_bounds = array<i64: 1, 8, 32>}, {transform_indices = @transform_1, window_bounds = array<i64: 1, 8, 32>}, {pipeline_mode = #tpu.pipeline_mode<synchronous>, transform_indices = @transform_2, window_bounds = array<i64: 32, 512>}, {pipeline_mode = #tpu.pipeline_mode<synchronous>, transform_indices = @transform_3, window_bounds = array<i64: 1, 512>}, {pipeline_mode = #tpu.pipeline_mode<synchronous>, transform_indices = @transform_4, window_bounds = array<i64: 32, 128>}, {pipeline_mode = #tpu.pipeline_mode<synchronous>, transform_indices = @transform_5, window_bounds = array<i64: 1, 128>}, {pipeline_mode = #tpu.pipeline_mode<synchronous>, transform_indices = @transform_6, window_bounds = array<i64: 32, 128>}, {pipeline_mode = #tpu.pipeline_mode<synchronous>, transform_indices = @transform_7, window_bounds = array<i64: 1, 128>}, {pipeline_mode = #tpu.pipeline_mode<synchronous>, transform_indices = @transform_8, window_bounds = array<i64: 512, 32>}, {pipeline_mode = #tpu.pipeline_mode<synchronous>, transform_indices = @transform_9, window_bounds = array<i64: 1, 32>}, {transform_indices = @transform_10, window_bounds = array<i64: 1, 8, 32>}]} {
    %c0_i32 = arith.constant 0 : i32
    %0 = arith.cmpi eq, %arg1, %c0_i32 : i32
    %1 = arith.extui %0 : i1 to i32
    %c0_i32_0 = arith.constant 0 : i32
    %2 = arith.cmpi ne, %1, %c0_i32_0 : i32
    scf.if %2 {
      %c0_41 = arith.constant 0 : index
      %c0_42 = arith.constant 0 : index
      %c0_43 = arith.constant 0 : index
      %66 = vector.load %arg3[%c0_41, %c0_42, %c0_43] : memref<1x8x32xbf16, #tpu.memory_space<vmem>>, vector<1x8x32xbf16>
      %67 = vector.shape_cast %66 : vector<1x8x32xbf16> to vector<8x32xbf16>
      %c0_44 = arith.constant 0 : index
      %c0_45 = arith.constant 0 : index
      %68 = vector.load %arg6[%c0_44, %c0_45] : memref<32x128xbf16, #tpu.memory_space<vmem>>, vector<32x128xbf16>
      %cst_46 = arith.constant dense<0.000000e+00> : vector<8x128xf32>
      %69 = tpu.matmul %67, %68, %cst_46 {dimension_numbers = #tpu.dot_dimension_numbers<[1], [0], [0], [1], [0, 0, 1, 1], [], []>} : vector<8x32xbf16>, vector<32x128xbf16>, vector<8x128xf32> -> vector<8x128xf32>
      %c0_47 = arith.constant 0 : index
      %c0_48 = arith.constant 0 : index
      %70 = vector.load %arg7[%c0_47, %c0_48] : memref<1x128xf32, #tpu.memory_space<vmem>>, vector<1x128xf32>
      %71 = vector.broadcast %70 : vector<1x128xf32> to vector<8x128xf32>
      %72 = arith.addf %69, %71 : vector<8x128xf32>
      %c0_49 = arith.constant 0 : index
      %c0_50 = arith.constant 0 : index
      %73 = vector.load %arg8[%c0_49, %c0_50] : memref<32x128xbf16, #tpu.memory_space<vmem>>, vector<32x128xbf16>
      %cst_51 = arith.constant dense<0.000000e+00> : vector<8x128xf32>
      %74 = tpu.matmul %67, %73, %cst_51 {dimension_numbers = #tpu.dot_dimension_numbers<[1], [0], [0], [1], [0, 0, 1, 1], [], []>} : vector<8x32xbf16>, vector<32x128xbf16>, vector<8x128xf32> -> vector<8x128xf32>
      %c0_52 = arith.constant 0 : index
      %c0_53 = arith.constant 0 : index
      %75 = vector.load %arg9[%c0_52, %c0_53] : memref<1x128xf32, #tpu.memory_space<vmem>>, vector<1x128xf32>
      %76 = vector.broadcast %75 : vector<1x128xf32> to vector<8x128xf32>
      %77 = arith.addf %74, %76 : vector<8x128xf32>
      %78 = arith.truncf %72 : vector<8x128xf32> to vector<8x128xbf16>
      %c0_54 = arith.constant 0 : index
      %c0_55 = arith.constant 0 : index
      %79 = vector.load %arg13[%c0_54, %c0_55] : memref<8x128xbf16, #tpu.memory_space<vmem>>, vector<8x128xbf16>
      tpu.vector_store %arg13[%c0_54, %c0_55], %78 {strides = array<i32>} : memref<8x128xbf16, #tpu.memory_space<vmem>>, vector<8x128xbf16>,
      %80 = arith.truncf %77 : vector<8x128xf32> to vector<8x128xbf16>
      %c0_56 = arith.constant 0 : index
      %c0_57 = arith.constant 0 : index
      %81 = vector.load %arg14[%c0_56, %c0_57] : memref<8x128xbf16, #tpu.memory_space<vmem>>, vector<8x128xbf16>
      tpu.vector_store %arg14[%c0_56, %c0_57], %80 {strides = array<i32>} : memref<8x128xbf16, #tpu.memory_space<vmem>>, vector<8x128xbf16>,
    } else {
    }
    %c0 = arith.constant 0 : index
    %c0_1 = arith.constant 0 : index
    %c0_2 = arith.constant 0 : index
    %3 = vector.load %arg2[%c0, %c0_1, %c0_2] : memref<1x8x32xbf16, #tpu.memory_space<vmem>>, vector<1x8x32xbf16>
    %4 = vector.shape_cast %3 : vector<1x8x32xbf16> to vector<8x32xbf16>
    %c0_3 = arith.constant 0 : index
    %c0_4 = arith.constant 0 : index
    %5 = vector.load %arg4[%c0_3, %c0_4] : memref<32x512xbf16, #tpu.memory_space<vmem>>, vector<32x512xbf16>
    %cst = arith.constant dense<0.000000e+00> : vector<8x512xf32>
    %6 = tpu.matmul %4, %5, %cst {dimension_numbers = #tpu.dot_dimension_numbers<[1], [0], [0], [1], [0, 0, 1, 1], [], []>} : vector<8x32xbf16>, vector<32x512xbf16>, vector<8x512xf32> -> vector<8x512xf32>
    %c0_5 = arith.constant 0 : index
    %c0_6 = arith.constant 0 : index
    %7 = vector.load %arg5[%c0_5, %c0_6] : memref<1x512xf32, #tpu.memory_space<vmem>>, vector<1x512xf32>
    %8 = vector.broadcast %7 : vector<1x512xf32> to vector<8x512xf32>
    %9 = arith.addf %6, %8 : vector<8x512xf32>
    %cst_7 = arith.constant 0.353553385 : f32
    %10 = vector.broadcast %cst_7 : f32 to vector<8x512xf32>
    %11 = arith.mulf %9, %10 : vector<8x512xf32>
    %12 = arith.truncf %11 : vector<8x512xf32> to vector<8x512xbf16>
    %13 = vector.extract_strided_slice %12 {offsets = [0, 0], sizes = [8, 128], strides = [1, 1]} : vector<8x512xbf16> to vector<8x128xbf16>
    %c0_8 = arith.constant 0 : index
    %c0_9 = arith.constant 0 : index
    %14 = vector.load %arg15[%c0_8, %c0_9] : memref<32x128xbf16, #tpu.memory_space<vmem>>, vector<8x128xbf16>
    tpu.vector_store %arg15[%c0_8, %c0_9], %13 {strides = array<i32>} : memref<32x128xbf16, #tpu.memory_space<vmem>>, vector<8x128xbf16>,
    %15 = vector.extract_strided_slice %12 {offsets = [0, 128], sizes = [8, 128], strides = [1, 1]} : vector<8x512xbf16> to vector<8x128xbf16>
    %c8 = arith.constant 8 : index
    %c0_10 = arith.constant 0 : index
    %16 = vector.load %arg15[%c8, %c0_10] : memref<32x128xbf16, #tpu.memory_space<vmem>>, vector<8x128xbf16>
    tpu.vector_store %arg15[%c8, %c0_10], %15 {strides = array<i32>} : memref<32x128xbf16, #tpu.memory_space<vmem>>, vector<8x128xbf16>,
    %17 = vector.extract_strided_slice %12 {offsets = [0, 256], sizes = [8, 128], strides = [1, 1]} : vector<8x512xbf16> to vector<8x128xbf16>
    %c16 = arith.constant 16 : index
    %c0_11 = arith.constant 0 : index
    %18 = vector.load %arg15[%c16, %c0_11] : memref<32x128xbf16, #tpu.memory_space<vmem>>, vector<8x128xbf16>
    tpu.vector_store %arg15[%c16, %c0_11], %17 {strides = array<i32>} : memref<32x128xbf16, #tpu.memory_space<vmem>>, vector<8x128xbf16>,
    %19 = vector.extract_strided_slice %12 {offsets = [0, 384], sizes = [8, 128], strides = [1, 1]} : vector<8x512xbf16> to vector<8x128xbf16>
    %c24 = arith.constant 24 : index
    %c0_12 = arith.constant 0 : index
    %20 = vector.load %arg15[%c24, %c0_12] : memref<32x128xbf16, #tpu.memory_space<vmem>>, vector<8x128xbf16>
    tpu.vector_store %arg15[%c24, %c0_12], %19 {strides = array<i32>} : memref<32x128xbf16, #tpu.memory_space<vmem>>, vector<8x128xbf16>,
    %c0_13 = arith.constant 0 : index
    %c0_14 = arith.constant 0 : index
    %21 = vector.load %arg15[%c0_13, %c0_14] : memref<32x128xbf16, #tpu.memory_space<vmem>>, vector<32x128xbf16>
    %cst_15 = arith.constant 0xFF800000 : f32
    %22 = vector.broadcast %cst_15 : f32 to vector<32x1xf32>
    %cst_16 = arith.constant 0.000000e+00 : f32
    %23 = vector.broadcast %cst_16 : f32 to vector<32x1xf32>
    %cst_17 = arith.constant 0.000000e+00 : f32
    %24 = vector.broadcast %cst_17 : f32 to vector<32x128xf32>
    %c0_18 = arith.constant 0 : index
    %c0_19 = arith.constant 0 : index
    %25 = vector.load %arg13[%c0_18, %c0_19] : memref<8x128xbf16, #tpu.memory_space<vmem>>, vector<8x128xbf16>
    %c0_20 = arith.constant 0 : index
    %c0_21 = arith.constant 0 : index
    %26 = vector.load %arg14[%c0_20, %c0_21] : memref<8x128xbf16, #tpu.memory_space<vmem>>, vector<8x128xbf16>
    %cst_22 = arith.constant dense<0.000000e+00> : vector<32x8xf32>
    %27 = tpu.matmul %21, %25, %cst_22 {dimension_numbers = #tpu.dot_dimension_numbers<[1], [1], [0], [0], [0, 0, 1, 0], [], []>} : vector<32x128xbf16>, vector<8x128xbf16>, vector<32x8xf32> -> vector<32x8xf32>
    %cst_23 = arith.constant dense<0xFF800000> : vector<32xf32>
    %28 = vector.multi_reduction <maximumf>, %27, %cst_23 [1] : vector<32x8xf32> to vector<32xf32>
    %29 = vector.shape_cast %28 : vector<32xf32> to vector<32x1xf32>
    %30 = arith.maximumf %22, %29 : vector<32x1xf32>
    %31 = arith.subf %22, %30 : vector<32x1xf32>
    %32 = math.exp %31 : vector<32x1xf32>
    %33 = vector.broadcast %30 : vector<32x1xf32> to vector<32x8xf32>
    %34 = arith.subf %27, %33 : vector<32x8xf32>
    %35 = math.exp %34 : vector<32x8xf32>
    %36 = arith.mulf %32, %23 : vector<32x1xf32>
    %cst_24 = arith.constant dense<0.000000e+00> : vector<32xf32>
    %37 = vector.multi_reduction <add>, %35, %cst_24 [1] : vector<32x8xf32> to vector<32xf32>
    %38 = vector.shape_cast %37 : vector<32xf32> to vector<32x1xf32>
    %39 = arith.addf %36, %38 : vector<32x1xf32>
    %40 = vector.broadcast %32 : vector<32x1xf32> to vector<32x128xf32>
    %41 = arith.mulf %40, %24 : vector<32x128xf32>
    %42 = arith.truncf %35 : vector<32x8xf32> to vector<32x8xbf16>
    %cst_25 = arith.constant dense<0.000000e+00> : vector<32x128xf32>
    %43 = tpu.matmul %42, %26, %cst_25 {dimension_numbers = #tpu.dot_dimension_numbers<[1], [0], [0], [1], [0, 0, 1, 1], [], []>} : vector<32x8xbf16>, vector<8x128xbf16>, vector<32x128xf32> -> vector<32x128xf32>
    %44 = arith.addf %41, %43 : vector<32x128xf32>
    %45 = tpu.reciprocal %39 {approx = true} : vector<32x1xf32> -> vector<32x1xf32>
    %46 = vector.broadcast %45 : vector<32x1xf32> to vector<32x128xf32>
    %47 = arith.mulf %44, %46 : vector<32x128xf32>
    %48 = arith.truncf %47 : vector<32x128xf32> to vector<32x128xbf16>
    %49 = vector.extract_strided_slice %48 {offsets = [0, 0], sizes = [8, 128], strides = [1, 1]} : vector<32x128xbf16> to vector<8x128xbf16>
    %c0_26 = arith.constant 0 : index
    %c0_27 = arith.constant 0 : index
    %50 = vector.load %arg16[%c0_26, %c0_27] : memref<8x512xbf16, #tpu.memory_space<vmem>>, vector<8x128xbf16>
    tpu.vector_store %arg16[%c0_26, %c0_27], %49 {strides = array<i32>} : memref<8x512xbf16, #tpu.memory_space<vmem>>, vector<8x128xbf16>,
    %51 = vector.extract_strided_slice %48 {offsets = [8, 0], sizes = [8, 128], strides = [1, 1]} : vector<32x128xbf16> to vector<8x128xbf16>
    %c0_28 = arith.constant 0 : index
    %c128 = arith.constant 128 : index
    %52 = vector.load %arg16[%c0_28, %c128] : memref<8x512xbf16, #tpu.memory_space<vmem>>, vector<8x128xbf16>
    tpu.vector_store %arg16[%c0_28, %c128], %51 {strides = array<i32>} : memref<8x512xbf16, #tpu.memory_space<vmem>>, vector<8x128xbf16>,
    %53 = vector.extract_strided_slice %48 {offsets = [16, 0], sizes = [8, 128], strides = [1, 1]} : vector<32x128xbf16> to vector<8x128xbf16>
    %c0_29 = arith.constant 0 : index
    %c256 = arith.constant 256 : index
    %54 = vector.load %arg16[%c0_29, %c256] : memref<8x512xbf16, #tpu.memory_space<vmem>>, vector<8x128xbf16>
    tpu.vector_store %arg16[%c0_29, %c256], %53 {strides = array<i32>} : memref<8x512xbf16, #tpu.memory_space<vmem>>, vector<8x128xbf16>,
    %55 = vector.extract_strided_slice %48 {offsets = [24, 0], sizes = [8, 128], strides = [1, 1]} : vector<32x128xbf16> to vector<8x128xbf16>
    %c0_30 = arith.constant 0 : index
    %c384 = arith.constant 384 : index
    %56 = vector.load %arg16[%c0_30, %c384] : memref<8x512xbf16, #tpu.memory_space<vmem>>, vector<8x128xbf16>
    tpu.vector_store %arg16[%c0_30, %c384], %55 {strides = array<i32>} : memref<8x512xbf16, #tpu.memory_space<vmem>>, vector<8x128xbf16>,
    %c0_31 = arith.constant 0 : index
    %c0_32 = arith.constant 0 : index
    %57 = vector.load %arg16[%c0_31, %c0_32] : memref<8x512xbf16, #tpu.memory_space<vmem>>, vector<8x512xbf16>
    %c0_33 = arith.constant 0 : index
    %c0_34 = arith.constant 0 : index
    %58 = vector.load %arg10[%c0_33, %c0_34] : memref<512x32xbf16, #tpu.memory_space<vmem>>, vector<512x32xbf16>
    %cst_35 = arith.constant dense<0.000000e+00> : vector<8x32xf32>
    %59 = tpu.matmul %57, %58, %cst_35 {dimension_numbers = #tpu.dot_dimension_numbers<[1], [0], [0], [1], [0, 0, 1, 1], [], []>} : vector<8x512xbf16>, vector<512x32xbf16>, vector<8x32xf32> -> vector<8x32xf32>
    %c0_36 = arith.constant 0 : index
    %c0_37 = arith.constant 0 : index
    %60 = vector.load %arg11[%c0_36, %c0_37] : memref<1x32xf32, #tpu.memory_space<vmem>>, vector<1x32xf32>
    %61 = vector.broadcast %60 : vector<1x32xf32> to vector<8x32xf32>
    %62 = arith.addf %59, %61 : vector<8x32xf32>
    %c0_38 = arith.constant 0 : index
    %c0_39 = arith.constant 0 : index
    %c0_40 = arith.constant 0 : index
    %63 = vector.load %arg12[%c0_38, %c0_39, %c0_40] : memref<1x8x32xf32, #tpu.memory_space<vmem>>, vector<1x8x32xf32>
    %64 = vector.shape_cast %63 : vector<1x8x32xf32> to vector<8x32xf32>
    %65 = vector.shape_cast %62 : vector<8x32xf32> to vector<1x8x32xf32>
    tpu.vector_store %arg12[%c0_38, %c0_39, %c0_40], %65 {strides = array<i32>} : memref<1x8x32xf32, #tpu.memory_space<vmem>>, vector<1x8x32xf32>,
    return
  }
  func.func @transform_0(%arg0: i32, %arg1: i32) -> (i32, i32, i32) {
    %c0_i32 = arith.constant 0 : i32
    %c0_i32_0 = arith.constant 0 : i32
    return %arg0, %arg1, %c0_i32 : i32, i32, i32
  }
  func.func @transform_1(%arg0: i32, %arg1: i32) -> (i32, i32, i32) {
    %c0_i32 = arith.constant 0 : i32
    %c0_i32_0 = arith.constant 0 : i32
    %c0_i32_1 = arith.constant 0 : i32
    return %arg0, %c0_i32, %c0_i32_0 : i32, i32, i32
  }
  func.func @transform_2(%arg0: i32, %arg1: i32) -> (i32, i32) {
    %c0_i32 = arith.constant 0 : i32
    %c0_i32_0 = arith.constant 0 : i32
    %c0_i32_1 = arith.constant 0 : i32
    return %c0_i32, %c0_i32_0 : i32, i32
  }
  func.func @transform_3(%arg0: i32, %arg1: i32) -> (i32, i32) {
    %c0_i32 = arith.constant 0 : i32
    %c0_i32_0 = arith.constant 0 : i32
    %c0_i32_1 = arith.constant 0 : i32
    return %c0_i32, %c0_i32_0 : i32, i32
  }
  func.func @transform_4(%arg0: i32, %arg1: i32) -> (i32, i32) {
    %c0_i32 = arith.constant 0 : i32
    %c0_i32_0 = arith.constant 0 : i32
    %c0_i32_1 = arith.constant 0 : i32
    return %c0_i32, %c0_i32_0 : i32, i32
  }
  func.func @transform_5(%arg0: i32, %arg1: i32) -> (i32, i32) {
    %c0_i32 = arith.constant 0 : i32
    %c0_i32_0 = arith.constant 0 : i32
    %c0_i32_1 = arith.constant 0 : i32
    return %c0_i32, %c0_i32_0 : i32, i32
  }
  func.func @transform_6(%arg0: i32, %arg1: i32) -> (i32, i32) {
    %c0_i32 = arith.constant 0 : i32
    %c0_i32_0 = arith.constant 0 : i32
    %c0_i32_1 = arith.constant 0 : i32
    return %c0_i32, %c0_i32_0 : i32, i32
  }
  func.func @transform_7(%arg0: i32, %arg1: i32) -> (i32, i32) {
    %c0_i32 = arith.constant 0 : i32
    %c0_i32_0 = arith.constant 0 : i32
    %c0_i32_1 = arith.constant 0 : i32
    return %c0_i32, %c0_i32_0 : i32, i32
  }
  func.func @transform_8(%arg0: i32, %arg1: i32) -> (i32, i32) {
    %c0_i32 = arith.constant 0 : i32
    %c0_i32_0 = arith.constant 0 : i32
    %c0_i32_1 = arith.constant 0 : i32
    return %c0_i32, %c0_i32_0 : i32, i32
  }
  func.func @transform_9(%arg0: i32, %arg1: i32) -> (i32, i32) {
    %c0_i32 = arith.constant 0 : i32
    %c0_i32_0 = arith.constant 0 : i32
    %c0_i32_1 = arith.constant 0 : i32
    return %c0_i32, %c0_i32_0 : i32, i32
  }
  func.func @transform_10(%arg0: i32, %arg1: i32) -> (i32, i32, i32) {
    %c0_i32 = arith.constant 0 : i32
    %c0_i32_0 = arith.constant 0 : i32
    return %arg0, %arg1, %c0_i32 : i32, i32, i32
  }
}

</mosaic_0001>

<llo_original>
// kernel: tpu_custom_call.1
$region0: #{tpu_custom_call.1}
  #allocation0 [shape = 'u32[]', space=smem, size = 0x4, offset = 0x4, fixed_abs, tag = 'smem constant byte address 0x4 - core index']
  #allocation1 [shape = 'u32[72,128]{1,0:T(1,128)}', space=vmem, size = 0x9000, scoped, tag = 'internal scratch']
  #allocation2 [shape = 'bf16[8,128]{1,0:T(8,128)(2,1)}', space=vmem, size = 0x800, scoped, tag = 'scratch operand']
  #allocation3 [shape = 'bf16[8,128]{1,0:T(8,128)(2,1)}', space=vmem, size = 0x800, scoped, tag = 'scratch operand']
  #allocation4 [shape = 'bf16[32,128]{1,0:T(8,128)(2,1)}', space=vmem, size = 0x2000, scoped, tag = 'scratch operand']
  #allocation5 [shape = 'bf16[8,512]{1,0:T(8,128)(2,1)}', space=vmem, size = 0x2000, scoped, tag = 'scratch operand']
  %s0 = inlined_call_operand.vmem [shape: bf16[2,8,32], index: 0, kind: input, shape index: {}]
  %s1 = inlined_call_operand.vmem [shape: bf16[2,8,32], index: 1, kind: input, shape index: {}]
  %s2 = inlined_call_operand.vmem [shape: bf16[32,512], index: 2, kind: input, shape index: {}]
  %s3 = inlined_call_operand.vmem [shape: f32[1,512], index: 3, kind: input, shape index: {}]
  %s4 = inlined_call_operand.vmem [shape: bf16[32,128], index: 4, kind: input, shape index: {}]
  %s5 = inlined_call_operand.vmem [shape: f32[1,128], index: 5, kind: input, shape index: {}]
  %s6 = inlined_call_operand.vmem [shape: bf16[32,128], index: 6, kind: input, shape index: {}]
  %s7 = inlined_call_operand.vmem [shape: f32[1,128], index: 7, kind: input, shape index: {}]
  %s8 = inlined_call_operand.vmem [shape: bf16[512,32], index: 8, kind: input, shape index: {}]
  %s9 = inlined_call_operand.vmem [shape: f32[1,32], index: 9, kind: input, shape index: {}]
  %s10 = inlined_call_operand.hbm [shape: f32[2,8,32], index: 10, kind: output, shape index: {}]
  %s11 = sld [smem:[#allocation0]]
  $region77: #{tpu_custom_call.1} parent=0
    _
  %s13 = ssub.s32 1, %s11
  %s14 = scalar_select 0, %s13, %s11
  $region1: #{tpu_custom_call.1} parent=0
    #allocation6 [shape = 'u8[8192]{0}', space=vmem, size = 0x2000, scoped, tag = 'output window, operand 0']
    #allocation7 [shape = 's32[2]{0}', space=sflag, size = 0x8, scoped, tag = 'scoped memory for tpu_custom_call.1']
    %15 = vsyncpa [#allocation7], 0
    %s16 = scalar_lea.sflag [#allocation7], 1
    %17 = vsyncpa %s16, 0
    loop: start=0, step=1, limit=4
    $region2: #{tpu_custom_call.1} parent=1 // loop_pre_header
      _
    $region3: #{tpu_custom_call.1} parent=1 // loop_header
      %s19 = sphi 0, %s23
      %p20 = scmp.ge.s32.totalorder %s19, 4
      %s26 = sphi 0, %s38
      %s27 = sphi 0, %s34
      %s28 = sphi 0, %s26
      %s29 = sphi 0, %s27
      %s30 = sphi 0, %s28
      %s31 = sphi 0, %s29
      %s43 = sphi 0, %s45
      %s46 = sphi 0, %s43
      %s47 = sphi 0, %s46
      %s63 = sphi 0, %s47
      %s69 = sphi 0, %s71
      %s72 = sphi 0, %s69
      %s73 = sphi 0, %s72
      %s89 = sphi 0, %s73
      %s93 = sphi 0, %s93
      %s95 = sphi 0, %s93
      %s96 = sphi 0, %s95
      %s110 = sphi 0, %s96
      %s114 = sphi 0, %s114
      %s116 = sphi 0, %s114
      %s117 = sphi 0, %s116
      %s131 = sphi 0, %s117
      %s135 = sphi 0, %s135
      %s137 = sphi 0, %s135
      %s138 = sphi 0, %s137
      %s152 = sphi 0, %s138
      %s156 = sphi 0, %s156
      %s158 = sphi 0, %s156
      %s159 = sphi 0, %s158
      %s173 = sphi 0, %s159
      %s177 = sphi 0, %s177
      %s179 = sphi 0, %s177
      %s180 = sphi 0, %s179
      %s194 = sphi 0, %s180
      %s198 = sphi 0, %s198
      %s200 = sphi 0, %s198
      %s201 = sphi 0, %s200
      %s215 = sphi 0, %s201
      %s219 = sphi 0, %s219
      %s221 = sphi 0, %s219
      %s222 = sphi 0, %s221
      %s236 = sphi 0, %s222
      %s240 = sphi 0, %s240
      %s242 = sphi 0, %s240
      %s243 = sphi 0, %s242
      %s257 = sphi 0, %s243
      %s265 = sphi 0, %s267
      %s268 = sphi 0, %s265
      %s269 = sphi 0, %s268
      %s285 = sphi 0, %s269
    $region4: #{tpu_custom_call.1} parent=1 // loop_header_branch
      %22 = sbr.rel (%p20) target = $region8
    $region5: #{tpu_custom_call.1} parent=1 // loop_body
      %s24 = ssub.s32 %s19, 1
      %s25 = ssub.s32 %s19, 2
      %s32 = sadd.s32 1, %s27
      %p33 = scmp.ge.s32.totalorder %s32, 1
      %s34 = scalar_select %p33, 0, %s32
      %s35 = sadd.s32 1, %s26
      %s36 = scalar_select %p33, %s35, %s26
      %p37 = scmp.ge.s32.totalorder %s36, 2
      %s38 = scalar_select %p37, 0, %s36
      %s39 = ssub.s32 %s26, %s38
      %s40 = ssub.s32 %s27, %s34
      %s41 = sor.u32 %s39, %s40
      %p42 = scmp.eq.s32.totalorder %s41, 0
      %s44 = sadd.s32 %s43, 1
      %s45 = scalar_select %p42, %s43, %s44
      %p48 = pneg %p42
      %p49 = scmp.eq.s32.totalorder %s19, 1
      %p50 = por %p48, %p49
      %p51 = scmp.ne.s32.totalorder %s43, %s46
      %p52 = scmp.eq.s32.totalorder %s19, 0
      %p53 = por %p51, %p52
      %p54 = scmp.ne.s32.totalorder %s43, %s46
      %p55 = scmp.eq.s32.totalorder %s24, 1
      %p56 = por %p54, %p55
      %p57 = scmp.ne.s32.totalorder %s46, %s47
      %p58 = scmp.eq.s32.totalorder %s24, 0
      %p59 = por %p57, %p58
      %p60 = scmp.ne.s32.totalorder %s46, %s47
      %p61 = scmp.eq.s32.totalorder %s25, 1
      %p62 = por %p60, %p61
      %p64 = scmp.ne.s32.totalorder %s47, %s63
      %p65 = scmp.eq.s32.totalorder %s25, 0
      %p66 = por %p64, %p65
      %s67 = ssub.s32 %s26, %s38
      %p68 = scmp.eq.s32.totalorder %s67, 0
      %s70 = sadd.s32 %s69, 1
      %s71 = scalar_select %p68, %s69, %s70
      %p74 = pneg %p68
      %p75 = scmp.eq.s32.totalorder %s19, 1
      %p76 = por %p74, %p75
      %p77 = scmp.ne.s32.totalorder %s69, %s72
      %p78 = scmp.eq.s32.totalorder %s19, 0
      %p79 = por %p77, %p78
      %p80 = scmp.ne.s32.totalorder %s69, %s72
      %p81 = scmp.eq.s32.totalorder %s24, 1
      %p82 = por %p80, %p81
      %p83 = scmp.ne.s32.totalorder %s72, %s73
      %p84 = scmp.eq.s32.totalorder %s24, 0
      %p85 = por %p83, %p84
      %p86 = scmp.ne.s32.totalorder %s72, %s73
      %p87 = scmp.eq.s32.totalorder %s25, 1
      %p88 = por %p86, %p87
      %p90 = scmp.ne.s32.totalorder %s73, %s89
      %p91 = scmp.eq.s32.totalorder %s25, 0
      %p92 = por %p90, %p91
      %s94 = sadd.s32 %s93, 1
      %p97 = scmp.eq.s32.totalorder %s19, 1
      %p98 = scmp.ne.s32.totalorder %s93, %s95
      %p99 = scmp.eq.s32.totalorder %s19, 0
      %p100 = por %p98, %p99
      %p101 = scmp.ne.s32.totalorder %s93, %s95
      %p102 = scmp.eq.s32.totalorder %s24, 1
      %p103 = por %p101, %p102
      %p104 = scmp.ne.s32.totalorder %s95, %s96
      %p105 = scmp.eq.s32.totalorder %s24, 0
      %p106 = por %p104, %p105
      %p107 = scmp.ne.s32.totalorder %s95, %s96
      %p108 = scmp.eq.s32.totalorder %s25, 1
      %p109 = por %p107, %p108
      %p111 = scmp.ne.s32.totalorder %s96, %s110
      %p112 = scmp.eq.s32.totalorder %s25, 0
      %p113 = por %p111, %p112
      %s115 = sadd.s32 %s114, 1
      %p118 = scmp.eq.s32.totalorder %s19, 1
      %p119 = scmp.ne.s32.totalorder %s114, %s116
      %p120 = scmp.eq.s32.totalorder %s19, 0
      %p121 = por %p119, %p120
      %p122 = scmp.ne.s32.totalorder %s114, %s116
      %p123 = scmp.eq.s32.totalorder %s24, 1
      %p124 = por %p122, %p123
      %p125 = scmp.ne.s32.totalorder %s116, %s117
      %p126 = scmp.eq.s32.totalorder %s24, 0
      %p127 = por %p125, %p126
      %p128 = scmp.ne.s32.totalorder %s116, %s117
      %p129 = scmp.eq.s32.totalorder %s25, 1
      %p130 = por %p128, %p129
      %p132 = scmp.ne.s32.totalorder %s117, %s131
      %p133 = scmp.eq.s32.totalorder %s25, 0
      %p134 = por %p132, %p133
      %s136 = sadd.s32 %s135, 1
      %p139 = scmp.eq.s32.totalorder %s19, 1
      %p140 = scmp.ne.s32.totalorder %s135, %s137
      %p141 = scmp.eq.s32.totalorder %s19, 0
      %p142 = por %p140, %p141
      %p143 = scmp.ne.s32.totalorder %s135, %s137
      %p144 = scmp.eq.s32.totalorder %s24, 1
      %p145 = por %p143, %p144
      %p146 = scmp.ne.s32.totalorder %s137, %s138
      %p147 = scmp.eq.s32.totalorder %s24, 0
      %p148 = por %p146, %p147
      %p149 = scmp.ne.s32.totalorder %s137, %s138
      %p150 = scmp.eq.s32.totalorder %s25, 1
      %p151 = por %p149, %p150
      %p153 = scmp.ne.s32.totalorder %s138, %s152
      %p154 = scmp.eq.s32.totalorder %s25, 0
      %p155 = por %p153, %p154
      %s157 = sadd.s32 %s156, 1
      %p160 = scmp.eq.s32.totalorder %s19, 1
      %p161 = scmp.ne.s32.totalorder %s156, %s158
      %p162 = scmp.eq.s32.totalorder %s19, 0
      %p163 = por %p161, %p162
      %p164 = scmp.ne.s32.totalorder %s156, %s158
      %p165 = scmp.eq.s32.totalorder %s24, 1
      %p166 = por %p164, %p165
      %p167 = scmp.ne.s32.totalorder %s158, %s159
      %p168 = scmp.eq.s32.totalorder %s24, 0
      %p169 = por %p167, %p168
      %p170 = scmp.ne.s32.totalorder %s158, %s159
      %p171 = scmp.eq.s32.totalorder %s25, 1
      %p172 = por %p170, %p171
      %p174 = scmp.ne.s32.totalorder %s159, %s173
      %p175 = scmp.eq.s32.totalorder %s25, 0
      %p176 = por %p174, %p175
      %s178 = sadd.s32 %s177, 1
      %p181 = scmp.eq.s32.totalorder %s19, 1
      %p182 = scmp.ne.s32.totalorder %s177, %s179
      %p183 = scmp.eq.s32.totalorder %s19, 0
      %p184 = por %p182, %p183
      %p185 = scmp.ne.s32.totalorder %s177, %s179
      %p186 = scmp.eq.s32.totalorder %s24, 1
      %p187 = por %p185, %p186
      %p188 = scmp.ne.s32.totalorder %s179, %s180
      %p189 = scmp.eq.s32.totalorder %s24, 0
      %p190 = por %p188, %p189
      %p191 = scmp.ne.s32.totalorder %s179, %s180
      %p192 = scmp.eq.s32.totalorder %s25, 1
      %p193 = por %p191, %p192
      %p195 = scmp.ne.s32.totalorder %s180, %s194
      %p196 = scmp.eq.s32.totalorder %s25, 0
      %p197 = por %p195, %p196
      %s199 = sadd.s32 %s198, 1
      %p202 = scmp.eq.s32.totalorder %s19, 1
      %p203 = scmp.ne.s32.totalorder %s198, %s200
      %p204 = scmp.eq.s32.totalorder %s19, 0
      %p205 = por %p203, %p204
      %p206 = scmp.ne.s32.totalorder %s198, %s200
      %p207 = scmp.eq.s32.totalorder %s24, 1
      %p208 = por %p206, %p207
      %p209 = scmp.ne.s32.totalorder %s200, %s201
      %p210 = scmp.eq.s32.totalorder %s24, 0
      %p211 = por %p209, %p210
      %p212 = scmp.ne.s32.totalorder %s200, %s201
      %p213 = scmp.eq.s32.totalorder %s25, 1
      %p214 = por %p212, %p213
      %p216 = scmp.ne.s32.totalorder %s201, %s215
      %p217 = scmp.eq.s32.totalorder %s25, 0
      %p218 = por %p216, %p217
      %s220 = sadd.s32 %s219, 1
      %p223 = scmp.eq.s32.totalorder %s19, 1
      %p224 = scmp.ne.s32.totalorder %s219, %s221
      %p225 = scmp.eq.s32.totalorder %s19, 0
      %p226 = por %p224, %p225
      %p227 = scmp.ne.s32.totalorder %s219, %s221
      %p228 = scmp.eq.s32.totalorder %s24, 1
      %p229 = por %p227, %p228
      %p230 = scmp.ne.s32.totalorder %s221, %s222
      %p231 = scmp.eq.s32.totalorder %s24, 0
      %p232 = por %p230, %p231
      %p233 = scmp.ne.s32.totalorder %s221, %s222
      %p234 = scmp.eq.s32.totalorder %s25, 1
      %p235 = por %p233, %p234
      %p237 = scmp.ne.s32.totalorder %s222, %s236
      %p238 = scmp.eq.s32.totalorder %s25, 0
      %p239 = por %p237, %p238
      %s241 = sadd.s32 %s240, 1
      %p244 = scmp.eq.s32.totalorder %s19, 1
      %p245 = scmp.ne.s32.totalorder %s240, %s242
      %p246 = scmp.eq.s32.totalorder %s19, 0
      %p247 = por %p245, %p246
      %p248 = scmp.ne.s32.totalorder %s240, %s242
      %p249 = scmp.eq.s32.totalorder %s24, 1
      %p250 = por %p248, %p249
      %p251 = scmp.ne.s32.totalorder %s242, %s243
      %p252 = scmp.eq.s32.totalorder %s24, 0
      %p253 = por %p251, %p252
      %p254 = scmp.ne.s32.totalorder %s242, %s243
      %p255 = scmp.eq.s32.totalorder %s25, 1
      %p256 = por %p254, %p255
      %p258 = scmp.ne.s32.totalorder %s243, %s257
      %p259 = scmp.eq.s32.totalorder %s25, 0
      %p260 = por %p258, %p259
      %s261 = ssub.s32 %s26, %s38
      %s262 = ssub.s32 %s27, %s34
      %s263 = sor.u32 %s261, %s262
      %p264 = scmp.eq.s32.totalorder %s263, 0
      %s266 = sadd.s32 %s265, 1
      %s267 = scalar_select %p264, %s265, %s266
      %p270 = pneg %p264
      %p271 = scmp.eq.s32.totalorder %s19, 1
      %p272 = por %p270, %p271
      %p273 = scmp.ne.s32.totalorder %s265, %s268
      %p274 = scmp.eq.s32.totalorder %s19, 0
      %p275 = por %p273, %p274
      %p276 = scmp.ne.s32.totalorder %s265, %s268
      %p277 = scmp.eq.s32.totalorder %s24, 1
      %p278 = por %p276, %p277
      %p279 = scmp.ne.s32.totalorder %s268, %s269
      %p280 = scmp.eq.s32.totalorder %s24, 0
      %p281 = por %p279, %p280
      %p282 = scmp.ne.s32.totalorder %s268, %s269
      %p283 = scmp.eq.s32.totalorder %s25, 1
      %p284 = por %p282, %p283
      %p286 = scmp.ne.s32.totalorder %s269, %s285
      %p287 = scmp.eq.s32.totalorder %s25, 0
      %p288 = por %p286, %p287
      %p289 = scmp.le.s32.totalorder 1, %s19
      %p290 = scmp.lt.s32.totalorder %s19, 3
      %p291 = pnand %p289, %p290
      %p292 = pneg %p291
      // Predicated region
      $region9: #{tpu_custom_call.1} parent=5 // pred_check
        _
      $region10: #{tpu_custom_call.1} parent=5 // pred_check_branch
        %294 = sbr.rel (%p291) target = $region12
      $region11: #{tpu_custom_call.1} parent=5 // pred_region
        %s295 = ssub.s32 %s19, 1
        // Predicated region
        $region13: #{tpu_custom_call.1} parent=11 // pred_check
          %p296 = pneg %p85
        $region14: #{tpu_custom_call.1} parent=11 // pred_check_branch
          %298 = sbr.rel (%p296) target = $region16
        $region15: #{tpu_custom_call.1} parent=11 // pred_region
          %p299 = scmp.lt.s32.totalorder %s28, 1
          %s300 = scalar_select %p299, %s28, 1
          %s301 = smul.addr %s300, 4
          %s302 = scalar_lea.vmem %s1, %s301
        $region16: #{tpu_custom_call.1} parent=11 // pred_fallthru
          _
        // Predicated region
        $region17: #{tpu_custom_call.1} parent=11 // pred_check
          %p303 = pneg %p106
        $region18: #{tpu_custom_call.1} parent=11 // pred_check_branch
          %305 = sbr.rel (%p303) target = $region20
        $region19: #{tpu_custom_call.1} parent=11 // pred_region
          _
        $region20: #{tpu_custom_call.1} parent=11 // pred_fallthru
          _
        // Predicated region
        $region21: #{tpu_custom_call.1} parent=11 // pred_check
          %p306 = pneg %p127
        $region22: #{tpu_custom_call.1} parent=11 // pred_check_branch
          %308 = sbr.rel (%p306) target = $region24
        $region23: #{tpu_custom_call.1} parent=11 // pred_region
          _
        $region24: #{tpu_custom_call.1} parent=11 // pred_fallthru
          _
        // Predicated region
        $region25: #{tpu_custom_call.1} parent=11 // pred_check
          %p309 = pneg %p148
        $region26: #{tpu_custom_call.1} parent=11 // pred_check_branch
          %311 = sbr.rel (%p309) target = $region28
        $region27: #{tpu_custom_call.1} parent=11 // pred_region
          _
        $region28: #{tpu_custom_call.1} parent=11 // pred_fallthru
          _
        // Predicated region
        $region29: #{tpu_custom_call.1} parent=11 // pred_check
          %p312 = pneg %p169
        $region30: #{tpu_custom_call.1} parent=11 // pred_check_branch
          %314 = sbr.rel (%p312) target = $region32
        $region31: #{tpu_custom_call.1} parent=11 // pred_region
          _
        $region32: #{tpu_custom_call.1} parent=11 // pred_fallthru
          _
        // Predicated region
        $region33: #{tpu_custom_call.1} parent=11 // pred_check
          %p315 = pneg %p190
        $region34: #{tpu_custom_call.1} parent=11 // pred_check_branch
          %317 = sbr.rel (%p315) target = $region36
        $region35: #{tpu_custom_call.1} parent=11 // pred_region
          _
        $region36: #{tpu_custom_call.1} parent=11 // pred_fallthru
          _
        // Predicated region
        $region37: #{tpu_custom_call.1} parent=11 // pred_check
          %p318 = pneg %p211
        $region38: #{tpu_custom_call.1} parent=11 // pred_check_branch
          %320 = sbr.rel (%p318) target = $region40
        $region39: #{tpu_custom_call.1} parent=11 // pred_region
          _
        $region40: #{tpu_custom_call.1} parent=11 // pred_fallthru
          _
        // Predicated region
        $region41: #{tpu_custom_call.1} parent=11 // pred_check
          %p321 = pneg %p232
        $region42: #{tpu_custom_call.1} parent=11 // pred_check_branch
          %323 = sbr.rel (%p321) target = $region44
        $region43: #{tpu_custom_call.1} parent=11 // pred_region
          _
        $region44: #{tpu_custom_call.1} parent=11 // pred_fallthru
          _
        // Predicated region
        $region45: #{tpu_custom_call.1} parent=11 // pred_check
          %p324 = pneg %p253
        $region46: #{tpu_custom_call.1} parent=11 // pred_check_branch
          %326 = sbr.rel (%p324) target = $region48
        $region47: #{tpu_custom_call.1} parent=11 // pred_region
          _
        $region48: #{tpu_custom_call.1} parent=11 // pred_fallthru
          _
      $region12: #{tpu_custom_call.1} parent=5 // pred_fallthru
        _
      %p327 = scmp.lt.s32.totalorder %s19, 2
      // Predicated region
      $region49: #{tpu_custom_call.1} parent=5 // pred_check
        %p328 = pneg %p327
      $region50: #{tpu_custom_call.1} parent=5 // pred_check_branch
        %330 = sbr.rel (%p328) target = $region52
      $region51: #{tpu_custom_call.1} parent=5 // pred_region
        // Predicated region
        $region53: #{tpu_custom_call.1} parent=51 // pred_check
          %p331 = pneg %p53
        $region54: #{tpu_custom_call.1} parent=51 // pred_check_branch
          %333 = sbr.rel (%p331) target = $region56
        $region55: #{tpu_custom_call.1} parent=51 // pred_region
          %p334 = scmp.lt.s32.totalorder %s26, 1
          %s335 = scalar_select %p334, %s26, 1
          %p336 = scmp.lt.s32.totalorder %s27, 0
          %s337 = scalar_select %p336, %s27, 0
          %s338 = sadd.s32 %s337, %s335
          %s339 = smul.addr %s338, 4
          %s340 = scalar_lea.vmem %s0, %s339
        $region56: #{tpu_custom_call.1} parent=51 // pred_fallthru
          _
      $region52: #{tpu_custom_call.1} parent=5 // pred_fallthru
        _
      %p341 = scmp.le.s32.totalorder 1, %s19
      %p342 = scmp.lt.s32.totalorder %s19, 3
      %p343 = pnand %p341, %p342
      %p344 = pneg %p343
      // Predicated region
      $region57: #{tpu_custom_call.1} parent=5 // pred_check
        _
      $region58: #{tpu_custom_call.1} parent=5 // pred_check_branch
        %346 = sbr.rel (%p343) target = $region60
      $region59: #{tpu_custom_call.1} parent=5 // pred_region
        %s347 = ssub.s32 %s19, 1
        %p348 = scmp.lt.s32.totalorder %s28, 1
        %s349 = scalar_select %p348, %s28, 1
        %p350 = scmp.lt.s32.totalorder %s29, 0
        %s351 = scalar_select %p350, %s29, 0
        %s352 = sadd.s32 %s351, %s349
        %s353 = smul.addr %s352, 4
        %s354 = scalar_lea.vmem %s0, %s353
        %p355 = pneg %p59
        %p356 = pneg %p56
        %p357 = scmp.lt.s32.totalorder %s28, 1
        %s358 = scalar_select %p357, %s28, 1
        %s359 = smul.addr %s358, 4
        %s360 = scalar_lea.vmem %s1, %s359
        %p361 = pneg %p85
        %p362 = pneg %p82
        %p363 = pneg %p106
        %p364 = pneg %p103
        %p365 = pneg %p127
        %p366 = pneg %p124
        %p367 = pneg %p148
        %p368 = pneg %p145
        %p369 = pneg %p169
        %p370 = pneg %p166
        %p371 = pneg %p190
        %p372 = pneg %p187
        %p373 = pneg %p211
        %p374 = pneg %p208
        %p375 = pneg %p232
        %p376 = pneg %p229
        %p377 = pneg %p253
        %p378 = pneg %p250
        %p379 = pneg %p281
        %p380 = pneg %p278
        %s381 = sand.u32 %s268, 1
        %s382 = scalar_lea.sflag [#allocation7], %s381
        %s383 = sand.u32 %s268, 1
        %s384 = smul.addr %s383, 8
        %s385 = scalar_lea.vmem [#allocation6], %s384
        %p386 = scmp.lt.s32.totalorder %s28, 1
        %s387 = scalar_select %p386, %s28, 1
        %p388 = scmp.lt.s32.totalorder %s29, 0
        %s389 = scalar_select %p388, %s29, 0
        %s390 = sadd.s32 %s389, %s387
        %s391 = smul.addr %s390, 4
        %s392 = scalar_lea.vmem %s0, %s391
        %p393 = scmp.lt.s32.totalorder %s28, 1
        %s394 = scalar_select %p393, %s28, 1
        %s395 = smul.addr %s394, 4
        %s396 = scalar_lea.vmem %s1, %s395
        %p398 = scmp.eq.s32.totalorder %s29, 0
        // Predicated region
        $region61: #{tpu_custom_call.1} parent=59 // pred_check
          %p399 = pneg %p398
        $region62: #{tpu_custom_call.1} parent=59 // pred_check_branch
          %401 = sbr.rel (%p399) target = $region64
        $region63: #{tpu_custom_call.1} parent=59 // pred_region
          %v402 = vld [vmem:[%s396] sm:$0xf]
          %v403 = vld [vmem:[%s4] sm:$0xf]
          %v404 = vld [vmem:[%s4 + $0x4] sm:$0xf]
          %v405 = vld [vmem:[%s4 + $0x8] sm:$0xf]
          %v406 = vld [vmem:[%s4 + $0xc] sm:$0xf]
          %v407 = vld [vmem:[%s5] sm:$0x1]
          %v409 = vperm.slane %v407, 0
          %v415 = vunpack.c.l.b16 %v403
          %v416 = vunpack.c.l.b16 %v404
          %v417 = vunpack.c.l.b16 %v405
          %v418 = vunpack.c.l.b16 %v406
          %v419 = vpack.c.b16 %v416, %v415
          %v420 = vpack.c.b16 %v418, %v417
          %vm423 = vcmask 261120
          %v425 = vsel %vm423, %v402, 0
          %427 = vmatpush.bf16.msra.mxu0 0
          %428 = vmatpush.bf16.msra.mxu0 0
          %429 = vmatpush.bf16.msra.mxu0 0
          %430 = vmatpush.bf16.msra.mxu0 0
          %431 = vmatpush.bf16.msra.mxu0 0
          %432 = vmatpush.bf16.msra.mxu0 0
          %433 = vmatpush.bf16.msra.mxu0 %v420
          %434 = vmatpush.bf16.msra.mxu0 %v419
          %435 = vmatmul.bf16.gmra.mxu0 %v425
          %v436 = vpop.f32.mrf.mxu0
          %v437 = vadd.f32 %v409, %v436
          %v438 = vpop.f32.mrf.mxu0
          %439 = vdwg.mxu0
          %v440 = vld [vmem:[%s6] sm:$0xf]
          %v441 = vld [vmem:[%s6 + $0x4] sm:$0xf]
          %v442 = vld [vmem:[%s6 + $0x8] sm:$0xf]
          %v443 = vld [vmem:[%s6 + $0xc] sm:$0xf]
          %v444 = vld [vmem:[%s7] sm:$0x1]
          %v446 = vperm.slane %v444, 0
          %v452 = vunpack.c.l.b16 %v440
          %v453 = vunpack.c.l.b16 %v441
          %v454 = vunpack.c.l.b16 %v442
          %v455 = vunpack.c.l.b16 %v443
          %v456 = vpack.c.b16 %v453, %v452
          %v457 = vpack.c.b16 %v455, %v454
          %460 = vmatpush.bf16.msra.mxu0 0
          %461 = vmatpush.bf16.msra.mxu0 0
          %462 = vmatpush.bf16.msra.mxu0 0
          %463 = vmatpush.bf16.msra.mxu0 0
          %464 = vmatpush.bf16.msra.mxu0 0
          %465 = vmatpush.bf16.msra.mxu0 0
          %466 = vmatpush.bf16.msra.mxu0 %v457
          %467 = vmatpush.bf16.msra.mxu0 %v456
          %468 = vmatmul.bf16.gmra.mxu0 %v425
          %v469 = vpop.f32.mrf.mxu0
          %v470 = vadd.f32 %v446, %v469
          %v471 = vpop.f32.mrf.mxu0
          %472 = vdwg.mxu0
          %v473 = vpack.c.bf16 %v437, %v437
          %474 = vst [vmem:[#allocation2] sm:$0xf] %v473
          %v475 = vpack.c.bf16 %v470, %v470
          %476 = vst [vmem:[#allocation3] sm:$0xf] %v475
        $region64: #{tpu_custom_call.1} parent=59 // pred_fallthru
          _
        %v477 = vld [vmem:[%s392] sm:$0xf]
        %v478 = vld [vmem:[%s2] sm:$0xff]
        %v479 = vld [vmem:[%s2 + $0x8] sm:$0xff]
        %v480 = vld [vmem:[%s2 + $0x10] sm:$0xff]
        %v481 = vld [vmem:[%s2 + $0x18] sm:$0xff]
        %v482 = vld [vmem:[%s2 + $0x20] sm:$0xff]
        %v483 = vld [vmem:[%s2 + $0x28] sm:$0xff]
        %v484 = vld [vmem:[%s2 + $0x30] sm:$0xff]
        %v485 = vld [vmem:[%s2 + $0x38] sm:$0xff]
        %v486 = vld [vmem:[%s3] sm:$0xf]
        %v488 = vperm.slane %v486, 0
        %v489 = vperm.slane %v486, 1
        %v490 = vperm.slane %v486, 2
        %v491 = vperm.slane %v486, 3
        %v504 = vunpack.c.l.b16 %v478
        %v505 = vunpack.c.h.b16 %v478
        %v506 = vunpack.c.l.b16 %v479
        %v507 = vunpack.c.h.b16 %v479
        %v508 = vunpack.c.l.b16 %v480
        %v509 = vunpack.c.h.b16 %v480
        %v510 = vunpack.c.l.b16 %v481
        %v511 = vunpack.c.h.b16 %v481
        %v512 = vunpack.c.l.b16 %v482
        %v513 = vunpack.c.h.b16 %v482
        %v514 = vunpack.c.l.b16 %v483
        %v515 = vunpack.c.h.b16 %v483
        %v516 = vunpack.c.l.b16 %v484
        %v517 = vunpack.c.h.b16 %v484
        %v518 = vunpack.c.l.b16 %v485
        %v519 = vunpack.c.h.b16 %v485
        %v520 = vpack.c.b16 %v508, %v504
        %v521 = vpack.c.b16 %v509, %v505
        %v522 = vpack.c.b16 %v510, %v506
        %v523 = vpack.c.b16 %v511, %v507
        %v524 = vpack.c.b16 %v516, %v512
        %v525 = vpack.c.b16 %v517, %v513
        %v526 = vpack.c.b16 %v518, %v514
        %v527 = vpack.c.b16 %v519, %v515
        %vm536 = vcmask 261120
        %v538 = vsel %vm536, %v477, 0
        %540 = vmatpush.bf16.msra.mxu0 0
        %541 = vmatpush.bf16.msra.mxu0 0
        %542 = vmatpush.bf16.msra.mxu0 0
        %543 = vmatpush.bf16.msra.mxu0 0
        %544 = vmatpush.bf16.msra.mxu0 0
        %545 = vmatpush.bf16.msra.mxu0 0
        %546 = vmatpush.bf16.msra.mxu0 %v524
        %547 = vmatpush.bf16.msra.mxu0 %v520
        %548 = vmatmul.bf16.gmra.mxu0 %v538
        %v549 = vpop.f32.mrf.mxu0
        %v550 = vadd.f32 %v488, %v549
        %v551 = vpop.f32.mrf.mxu0
        %552 = vdwg.mxu0
        %553 = vmatpush.bf16.msra.mxu0 0
        %554 = vmatpush.bf16.msra.mxu0 0
        %555 = vmatpush.bf16.msra.mxu0 0
        %556 = vmatpush.bf16.msra.mxu0 0
        %557 = vmatpush.bf16.msra.mxu0 0
        %558 = vmatpush.bf16.msra.mxu0 0
        %559 = vmatpush.bf16.msra.mxu0 %v525
        %560 = vmatpush.bf16.msra.mxu0 %v521
        %561 = vmatmul.bf16.gmra.mxu0 %v538
        %v562 = vpop.f32.mrf.mxu0
        %v563 = vadd.f32 %v489, %v562
        %v564 = vpop.f32.mrf.mxu0
        %565 = vdwg.mxu0
        %566 = vmatpush.bf16.msra.mxu0 0
        %567 = vmatpush.bf16.msra.mxu0 0
        %568 = vmatpush.bf16.msra.mxu0 0
        %569 = vmatpush.bf16.msra.mxu0 0
        %570 = vmatpush.bf16.msra.mxu0 0
        %571 = vmatpush.bf16.msra.mxu0 0
        %572 = vmatpush.bf16.msra.mxu0 %v526
        %573 = vmatpush.bf16.msra.mxu0 %v522
        %574 = vmatmul.bf16.gmra.mxu0 %v538
        %v575 = vpop.f32.mrf.mxu0
        %v576 = vadd.f32 %v490, %v575
        %v577 = vpop.f32.mrf.mxu0
        %578 = vdwg.mxu0
        %579 = vmatpush.bf16.msra.mxu0 0
        %580 = vmatpush.bf16.msra.mxu0 0
        %581 = vmatpush.bf16.msra.mxu0 0
        %582 = vmatpush.bf16.msra.mxu0 0
        %583 = vmatpush.bf16.msra.mxu0 0
        %584 = vmatpush.bf16.msra.mxu0 0
        %585 = vmatpush.bf16.msra.mxu0 %v527
        %586 = vmatpush.bf16.msra.mxu0 %v523
        %587 = vmatmul.bf16.gmra.mxu0 %v538
        %v588 = vpop.f32.mrf.mxu0
        %v589 = vadd.f32 %v491, %v588
        %v590 = vpop.f32.mrf.mxu0
        %591 = vdwg.mxu0
        %v592 = vmul.f32 %v550, 0.35355338
        %v593 = vmul.f32 %v563, 0.35355338
        %v594 = vmul.f32 %v576, 0.35355338
        %v595 = vmul.f32 %v589, 0.35355338
        %v596 = vpack.c.bf16 %v593, %v592
        %v597 = vpack.c.bf16 %v595, %v594
        %598 = vst [vmem:[#allocation4] sm:$0xf] %v596
        %v600 = vrot.slane %v596, 4
        %602 = vst [vmem:[#allocation4 + $0x4] sm:$0xf] %v600
        %603 = vst [vmem:[#allocation4 + $0x8] sm:$0xf] %v597
        %v605 = vrot.slane %v597, 4
        %607 = vst [vmem:[#allocation4 + $0xc] sm:$0xf] %v605
        %v608 = vld [vmem:[#allocation4] sm:$0xf]
        %v609 = vld [vmem:[#allocation4 + $0x4] sm:$0xf]
        %v610 = vld [vmem:[#allocation4 + $0x8] sm:$0xf]
        %v611 = vld [vmem:[#allocation4 + $0xc] sm:$0xf]
        %v612 = vld [vmem:[#allocation2] sm:$0xf]
        %v613 = vld [vmem:[#allocation3] sm:$0xf]
        %v618 = vunpack.c.l.b16 %v608
        %v619 = vunpack.c.l.b16 %v609
        %v620 = vunpack.c.l.b16 %v610
        %v621 = vunpack.c.l.b16 %v611
        %v622 = vpack.c.b16 %v619, %v618
        %v623 = vpack.c.b16 %v621, %v620
        %626 = vmatpush.bf16.xpose.msra.mxu0 0
        %627 = vmatpush.bf16.xpose.msra.mxu0 0
        %628 = vmatpush.bf16.xpose.msra.mxu0 0
        %629 = vmatpush.bf16.xpose.msra.mxu0 0
        %630 = vmatpush.bf16.xpose.msra.mxu0 0
        %631 = vmatpush.bf16.xpose.msra.mxu0 0
        %632 = vmatpush.bf16.xpose.msra.mxu0 0
        %633 = vmatpush.bf16.xpose.msra.mxu0 %v612
        %634 = vmatmul.bf16.gmra.mxu0 %v622
        %v635 = vpop.f32.mrf.mxu0
        %v636 = vadd.f32 0.0, %v635
        %v637 = vpop.f32.mrf.mxu0
        %v638 = vadd.f32 0.0, %v637
        %639 = vmatmul.bf16.gmra.mxu0 %v623
        %v640 = vpop.f32.mrf.mxu0
        %v641 = vadd.f32 0.0, %v640
        %v642 = vpop.f32.mrf.mxu0
        %v643 = vadd.f32 0.0, %v642
        %644 = vdwg.mxu0
        %vm645 = vcmask 64512
        %v646 = vsel %vm645, %v636, -inf
        %647 = vmax.xlane.f32.xlu0 %v646
        %v648 = vpop.xlane.xlu0 %647
        %v649 = vsel %vm645, %v638, -inf
        %650 = vmax.xlane.f32.xlu0 %v649
        %v651 = vpop.xlane.xlu0 %650
        %v652 = vsel %vm645, %v641, -inf
        %653 = vmax.xlane.f32.xlu0 %v652
        %v654 = vpop.xlane.xlu0 %653
        %v655 = vsel %vm645, %v643, -inf
        %656 = vmax.xlane.f32.xlu0 %v655
        %v657 = vpop.xlane.xlu0 %656
        %v658 = vsub.f32 -inf, %v648
        %v659 = vsub.f32 -inf, %v651
        %v660 = vsub.f32 -inf, %v654
        %v661 = vsub.f32 -inf, %v657
        %v662 = vmul.f32 %v658, 1.442695
        %v663 = vpow.pop %v662
        %v664 = vmul.f32 %v659, 1.442695
        %v665 = vpow.pop %v664
        %v666 = vmul.f32 %v660, 1.442695
        %v667 = vpow.pop %v666
        %v668 = vmul.f32 %v661, 1.442695
        %v669 = vpow.pop %v668
        %v670 = vsub.f32 %v636, %v648
        %v671 = vsub.f32 %v638, %v651
        %v672 = vsub.f32 %v641, %v654
        %v673 = vsub.f32 %v643, %v657
        %v674 = vmul.f32 %v670, 1.442695
        %v675 = vpow.pop %v674
        %v676 = vmul.f32 %v671, 1.442695
        %v677 = vpow.pop %v676
        %v678 = vmul.f32 %v672, 1.442695
        %v679 = vpow.pop %v678
        %v680 = vmul.f32 %v673, 1.442695
        %v681 = vpow.pop %v680
        %v682 = vmul.f32 %v663, 0.0
        %v683 = vmul.f32 %v665, 0.0
        %v684 = vmul.f32 %v667, 0.0
        %v685 = vmul.f32 %v669, 0.0
        %v686 = vsel %vm645, %v675, 0.0
        %687 = vadd.xlane.f32.xlu0 %v686
        %v688 = vpop.xlane.xlu0 %687
        %v689 = vsel %vm645, %v677, 0.0
        %690 = vadd.xlane.f32.xlu0 %v689
        %v691 = vpop.xlane.xlu0 %690
        %v692 = vsel %vm645, %v679, 0.0
        %693 = vadd.xlane.f32.xlu0 %v692
        %v694 = vpop.xlane.xlu0 %693
        %v695 = vsel %vm645, %v681, 0.0
        %696 = vadd.xlane.f32.xlu0 %v695
        %v697 = vpop.xlane.xlu0 %696
        %v698 = vadd.f32 %v682, %v688
        %v699 = vadd.f32 %v683, %v691
        %v700 = vadd.f32 %v684, %v694
        %v701 = vadd.f32 %v685, %v697
        %v702 = vpack.c.bf16 %v677, %v675
        %v703 = vpack.c.bf16 %v681, %v679
        %v705 = vsel %vm645, %v702, 0
        %v708 = vsel %vm645, %v703, 0
        %vm710 = vcmask 1043456
        %v712 = vsel %vm710, %v613, 0
        %714 = vmatpush.bf16.msra.mxu0 0
        %715 = vmatpush.bf16.msra.mxu0 0
        %716 = vmatpush.bf16.msra.mxu0 0
        %717 = vmatpush.bf16.msra.mxu0 0
        %718 = vmatpush.bf16.msra.mxu0 0
        %719 = vmatpush.bf16.msra.mxu0 0
        %720 = vmatpush.bf16.msra.mxu0 0
        %721 = vmatpush.bf16.msra.mxu0 %v712
        %722 = vmatmul.bf16.gmra.mxu0 %v705
        %v723 = vpop.f32.mrf.mxu0
        %v724 = vadd.f32 0.0, %v723
        %v725 = vpop.f32.mrf.mxu0
        %v726 = vadd.f32 0.0, %v725
        %727 = vmatmul.bf16.gmra.mxu0 %v708
        %v728 = vpop.f32.mrf.mxu0
        %v729 = vadd.f32 0.0, %v728
        %v730 = vpop.f32.mrf.mxu0
        %v731 = vadd.f32 0.0, %v730
        %732 = vdwg.mxu0
        %v733 = vadd.f32 %v682, %v724
        %v734 = vadd.f32 %v683, %v726
        %v735 = vadd.f32 %v684, %v729
        %v736 = vadd.f32 %v685, %v731
        %v737 = vrcp.pop %v698
        %v738 = vrcp.pop %v699
        %v739 = vrcp.pop %v700
        %v740 = vrcp.pop %v701
        %v741 = vmul.f32 %v733, %v737
        %v742 = vmul.f32 %v734, %v738
        %v743 = vmul.f32 %v735, %v739
        %v744 = vmul.f32 %v736, %v740
        %v745 = vpack.c.bf16 %v741, %v741
        %v746 = vpack.c.bf16 %v742, %v742
        %v747 = vpack.c.bf16 %v743, %v743
        %v748 = vpack.c.bf16 %v744, %v744
        %749 = vst [vmem:[#allocation5] sm:$0xf] %v745
        %750 = vst [vmem:[#allocation5 + $0x4] sm:$0xf] %v746
        %751 = vst [vmem:[#allocation5 + $0x8] sm:$0xf] %v747
        %752 = vst [vmem:[#allocation5 + $0xc] sm:$0xf] %v748
        %v753 = vld [vmem:[#allocation5] sm:$0xff]
        %v754 = vld [vmem:[#allocation5 + $0x8] sm:$0xff]
        %v755 = vld [vmem:[%s8] sm:$0xf]
        %v756 = vld [vmem:[%s8 + $0x4] sm:$0xf]
        %v757 = vld [vmem:[%s8 + $0x8] sm:$0xf]
        %v758 = vld [vmem:[%s8 + $0xc] sm:$0xf]
        %v759 = vld [vmem:[%s8 + $0x10] sm:$0xf]
        %v760 = vld [vmem:[%s8 + $0x14] sm:$0xf]
        %v761 = vld [vmem:[%s8 + $0x18] sm:$0xf]
        %v762 = vld [vmem:[%s8 + $0x1c] sm:$0xf]
        %v763 = vld [vmem:[%s8 + $0x20] sm:$0xf]
        %v764 = vld [vmem:[%s8 + $0x24] sm:$0xf]
        %v765 = vld [vmem:[%s8 + $0x28] sm:$0xf]
        %v766 = vld [vmem:[%s8 + $0x2c] sm:$0xf]
        %v767 = vld [vmem:[%s8 + $0x30] sm:$0xf]
        %v768 = vld [vmem:[%s8 + $0x34] sm:$0xf]
        %v769 = vld [vmem:[%s8 + $0x38] sm:$0xf]
        %v770 = vld [vmem:[%s8 + $0x3c] sm:$0xf]
        %v771 = vld [vmem:[%s8 + $0x40] sm:$0xf]
        %v772 = vld [vmem:[%s8 + $0x44] sm:$0xf]
        %v773 = vld [vmem:[%s8 + $0x48] sm:$0xf]
        %v774 = vld [vmem:[%s8 + $0x4c] sm:$0xf]
        %v775 = vld [vmem:[%s8 + $0x50] sm:$0xf]
        %v776 = vld [vmem:[%s8 + $0x54] sm:$0xf]
        %v777 = vld [vmem:[%s8 + $0x58] sm:$0xf]
        %v778 = vld [vmem:[%s8 + $0x5c] sm:$0xf]
        %v779 = vld [vmem:[%s8 + $0x60] sm:$0xf]
        %v780 = vld [vmem:[%s8 + $0x64] sm:$0xf]
        %v781 = vld [vmem:[%s8 + $0x68] sm:$0xf]
        %v782 = vld [vmem:[%s8 + $0x6c] sm:$0xf]
        %v783 = vld [vmem:[%s8 + $0x70] sm:$0xf]
        %v784 = vld [vmem:[%s8 + $0x74] sm:$0xf]
        %v785 = vld [vmem:[%s8 + $0x78] sm:$0xf]
        %v786 = vld [vmem:[%s8 + $0x7c] sm:$0xf]
        %v787 = vld [vmem:[%s8 + $0x80] sm:$0xf]
        %v788 = vld [vmem:[%s8 + $0x84] sm:$0xf]
        %v789 = vld [vmem:[%s8 + $0x88] sm:$0xf]
        %v790 = vld [vmem:[%s8 + $0x8c] sm:$0xf]
        %v791 = vld [vmem:[%s8 + $0x90] sm:$0xf]
        %v792 = vld [vmem:[%s8 + $0x94] sm:$0xf]
        %v793 = vld [vmem:[%s8 + $0x98] sm:$0xf]
        %v794 = vld [vmem:[%s8 + $0x9c] sm:$0xf]
        %v795 = vld [vmem:[%s8 + $0xa0] sm:$0xf]
        %v796 = vld [vmem:[%s8 + $0xa4] sm:$0xf]
        %v797 = vld [vmem:[%s8 + $0xa8] sm:$0xf]
        %v798 = vld [vmem:[%s8 + $0xac] sm:$0xf]
        %v799 = vld [vmem:[%s8 + $0xb0] sm:$0xf]
        %v800 = vld [vmem:[%s8 + $0xb4] sm:$0xf]
        %v801 = vld [vmem:[%s8 + $0xb8] sm:$0xf]
        %v802 = vld [vmem:[%s8 + $0xbc] sm:$0xf]
        %v803 = vld [vmem:[%s8 + $0xc0] sm:$0xf]
        %v804 = vld [vmem:[%s8 + $0xc4] sm:$0xf]
        %v805 = vld [vmem:[%s8 + $0xc8] sm:$0xf]
        %v806 = vld [vmem:[%s8 + $0xcc] sm:$0xf]
        %v807 = vld [vmem:[%s8 + $0xd0] sm:$0xf]
        %v808 = vld [vmem:[%s8 + $0xd4] sm:$0xf]
        %v809 = vld [vmem:[%s8 + $0xd8] sm:$0xf]
        %v810 = vld [vmem:[%s8 + $0xdc] sm:$0xf]
        %v811 = vld [vmem:[%s8 + $0xe0] sm:$0xf]
        %v812 = vld [vmem:[%s8 + $0xe4] sm:$0xf]
        %v813 = vld [vmem:[%s8 + $0xe8] sm:$0xf]
        %v814 = vld [vmem:[%s8 + $0xec] sm:$0xf]
        %v815 = vld [vmem:[%s8 + $0xf0] sm:$0xf]
        %v816 = vld [vmem:[%s8 + $0xf4] sm:$0xf]
        %v817 = vld [vmem:[%s8 + $0xf8] sm:$0xf]
        %v818 = vld [vmem:[%s8 + $0xfc] sm:$0xf]
        %v819 = vld [vmem:[%s9] sm:$0x1]
        %v821 = vperm.slane %v819, 0
        %v825 = vunpack.c.l.b16 %v753
        %v826 = vunpack.c.h.b16 %v753
        %v827 = vunpack.c.l.b16 %v754
        %v828 = vunpack.c.h.b16 %v754
        %v829 = vpack.c.b16 %v825, %v825
        %v830 = vpack.c.b16 %v826, %v826
        %v831 = vpack.c.b16 %v827, %v827
        %v832 = vpack.c.b16 %v828, %v828
        %v901 = vunpack.c.l.b16 %v755
        %v902 = vunpack.c.l.b16 %v756
        %v903 = vunpack.c.l.b16 %v757
        %v904 = vunpack.c.l.b16 %v758
        %v905 = vunpack.c.l.b16 %v759
        %v906 = vunpack.c.l.b16 %v760
        %v907 = vunpack.c.l.b16 %v761
        %v908 = vunpack.c.l.b16 %v762
        %v909 = vunpack.c.l.b16 %v763
        %v910 = vunpack.c.l.b16 %v764
        %v911 = vunpack.c.l.b16 %v765
        %v912 = vunpack.c.l.b16 %v766
        %v913 = vunpack.c.l.b16 %v767
        %v914 = vunpack.c.l.b16 %v768
        %v915 = vunpack.c.l.b16 %v769
        %v916 = vunpack.c.l.b16 %v770
        %v917 = vunpack.c.l.b16 %v771
        %v918 = vunpack.c.l.b16 %v772
        %v919 = vunpack.c.l.b16 %v773
        %v920 = vunpack.c.l.b16 %v774
        %v921 = vunpack.c.l.b16 %v775
        %v922 = vunpack.c.l.b16 %v776
        %v923 = vunpack.c.l.b16 %v777
        %v924 = vunpack.c.l.b16 %v778
        %v925 = vunpack.c.l.b16 %v779
        %v926 = vunpack.c.l.b16 %v780
        %v927 = vunpack.c.l.b16 %v781
        %v928 = vunpack.c.l.b16 %v782
        %v929 = vunpack.c.l.b16 %v783
        %v930 = vunpack.c.l.b16 %v784
        %v931 = vunpack.c.l.b16 %v785
        %v932 = vunpack.c.l.b16 %v786
        %v933 = vunpack.c.l.b16 %v787
        %v934 = vunpack.c.l.b16 %v788
        %v935 = vunpack.c.l.b16 %v789
        %v936 = vunpack.c.l.b16 %v790
        %v937 = vunpack.c.l.b16 %v791
        %v938 = vunpack.c.l.b16 %v792
        %v939 = vunpack.c.l.b16 %v793
        %v940 = vunpack.c.l.b16 %v794
        %v941 = vunpack.c.l.b16 %v795
        %v942 = vunpack.c.l.b16 %v796
        %v943 = vunpack.c.l.b16 %v797
        %v944 = vunpack.c.l.b16 %v798
        %v945 = vunpack.c.l.b16 %v799
        %v946 = vunpack.c.l.b16 %v800
        %v947 = vunpack.c.l.b16 %v801
        %v948 = vunpack.c.l.b16 %v802
        %v949 = vunpack.c.l.b16 %v803
        %v950 = vunpack.c.l.b16 %v804
        %v951 = vunpack.c.l.b16 %v805
        %v952 = vunpack.c.l.b16 %v806
        %v953 = vunpack.c.l.b16 %v807
        %v954 = vunpack.c.l.b16 %v808
        %v955 = vunpack.c.l.b16 %v809
        %v956 = vunpack.c.l.b16 %v810
        %v957 = vunpack.c.l.b16 %v811
        %v958 = vunpack.c.l.b16 %v812
        %v959 = vunpack.c.l.b16 %v813
        %v960 = vunpack.c.l.b16 %v814
        %v961 = vunpack.c.l.b16 %v815
        %v962 = vunpack.c.l.b16 %v816
        %v963 = vunpack.c.l.b16 %v817
        %v964 = vunpack.c.l.b16 %v818
        %v965 = vpack.c.b16 %v902, %v901
        %v966 = vpack.c.b16 %v904, %v903
        %v967 = vpack.c.b16 %v906, %v905
        %v968 = vpack.c.b16 %v908, %v907
        %v969 = vpack.c.b16 %v910, %v909
        %v970 = vpack.c.b16 %v912, %v911
        %v971 = vpack.c.b16 %v914, %v913
        %v972 = vpack.c.b16 %v916, %v915
        %v973 = vpack.c.b16 %v918, %v917
        %v974 = vpack.c.b16 %v920, %v919
        %v975 = vpack.c.b16 %v922, %v921
        %v976 = vpack.c.b16 %v924, %v923
        %v977 = vpack.c.b16 %v926, %v925
        %v978 = vpack.c.b16 %v928, %v927
        %v979 = vpack.c.b16 %v930, %v929
        %v980 = vpack.c.b16 %v932, %v931
        %v981 = vpack.c.b16 %v934, %v933
        %v982 = vpack.c.b16 %v936, %v935
        %v983 = vpack.c.b16 %v938, %v937
        %v984 = vpack.c.b16 %v940, %v939
        %v985 = vpack.c.b16 %v942, %v941
        %v986 = vpack.c.b16 %v944, %v943
        %v987 = vpack.c.b16 %v946, %v945
        %v988 = vpack.c.b16 %v948, %v947
        %v989 = vpack.c.b16 %v950, %v949
        %v990 = vpack.c.b16 %v952, %v951
        %v991 = vpack.c.b16 %v954, %v953
        %v992 = vpack.c.b16 %v956, %v955
        %v993 = vpack.c.b16 %v958, %v957
        %v994 = vpack.c.b16 %v960, %v959
        %v995 = vpack.c.b16 %v962, %v961
        %v996 = vpack.c.b16 %v964, %v963
        %1029 = vmatpush.bf16.msra.mxu0 %v972
        %1030 = vmatpush.bf16.msra.mxu0 %v971
        %1031 = vmatpush.bf16.msra.mxu0 %v970
        %1032 = vmatpush.bf16.msra.mxu0 %v969
        %1033 = vmatpush.bf16.msra.mxu0 %v968
        %1034 = vmatpush.bf16.msra.mxu0 %v967
        %1035 = vmatpush.bf16.msra.mxu0 %v966
        %1036 = vmatpush.bf16.msra.mxu0 %v965
        %1037 = vmatmul.bf16.gmra.mxu0 %v829
        %v1038 = vpop.f32.mrf.mxu0
        %v1039 = vadd.f32 %v821, %v1038
        %v1040 = vpop.f32.mrf.mxu0
        %1041 = vdwg.mxu0
        %1042 = vmatpush.bf16.msra.mxu0 %v980
        %1043 = vmatpush.bf16.msra.mxu0 %v979
        %1044 = vmatpush.bf16.msra.mxu0 %v978
        %1045 = vmatpush.bf16.msra.mxu0 %v977
        %1046 = vmatpush.bf16.msra.mxu0 %v976
        %1047 = vmatpush.bf16.msra.mxu0 %v975
        %1048 = vmatpush.bf16.msra.mxu0 %v974
        %1049 = vmatpush.bf16.msra.mxu0 %v973
        %1050 = vmatmul.bf16.gmra.mxu0 %v830
        %v1051 = vpop.f32.mrf.mxu0
        %v1052 = vadd.f32 %v1039, %v1051
        %v1053 = vpop.f32.mrf.mxu0
        %1054 = vdwg.mxu0
        %1055 = vmatpush.bf16.msra.mxu0 %v988
        %1056 = vmatpush.bf16.msra.mxu0 %v987
        %1057 = vmatpush.bf16.msra.mxu0 %v986
        %1058 = vmatpush.bf16.msra.mxu0 %v985
        %1059 = vmatpush.bf16.msra.mxu0 %v984
        %1060 = vmatpush.bf16.msra.mxu0 %v983
        %1061 = vmatpush.bf16.msra.mxu0 %v982
        %1062 = vmatpush.bf16.msra.mxu0 %v981
        %1063 = vmatmul.bf16.gmra.mxu0 %v831
        %v1064 = vpop.f32.mrf.mxu0
        %v1065 = vadd.f32 %v1052, %v1064
        %v1066 = vpop.f32.mrf.mxu0
        %1067 = vdwg.mxu0
        %1068 = vmatpush.bf16.msra.mxu0 %v996
        %1069 = vmatpush.bf16.msra.mxu0 %v995
        %1070 = vmatpush.bf16.msra.mxu0 %v994
        %1071 = vmatpush.bf16.msra.mxu0 %v993
        %1072 = vmatpush.bf16.msra.mxu0 %v992
        %1073 = vmatpush.bf16.msra.mxu0 %v991
        %1074 = vmatpush.bf16.msra.mxu0 %v990
        %1075 = vmatpush.bf16.msra.mxu0 %v989
        %1076 = vmatmul.bf16.gmra.mxu0 %v832
        %v1077 = vpop.f32.mrf.mxu0
        %v1078 = vadd.f32 %v1065, %v1077
        %v1079 = vpop.f32.mrf.mxu0
        %1080 = vdwg.mxu0
        %1081 = vst.msk [vmem:[%s385] sm:$0xff] %vm536, %v1078
        %s1082 = sand.u32 %s268, 1
        %s1083 = scalar_lea.sflag [#allocation7], %s1082
        %s1084 = sand.u32 %s268, 1
        %s1085 = smul.addr %s1084, 8
        %s1086 = scalar_lea.vmem [#allocation6], %s1085
        // Predicated region
        $region65: #{tpu_custom_call.1} parent=59 // pred_check
          %p1087 = pneg %p278
        $region66: #{tpu_custom_call.1} parent=59 // pred_check_branch
          %1089 = sbr.rel (%p1087) target = $region68
        $region67: #{tpu_custom_call.1} parent=59 // pred_region
          %1091 = vsyncadd %s1083, 0
          %s1092 = sadd.s32 %s29, %s28
          %s1093 = smul.addr %s1092, 8
          %s1094 = scalar_lea.hbm %s10, %s1093
          %s1096 = sshll.u32 %s1086, 4
          %s1097 = int_to_ptr.vmem [resolvable:$true] %s1096
          %s1098 = sshll.u32 %s1094, 4
          %s1099 = int_to_ptr.hbm [resolvable:$true] %s1098
          %1101 = dma.vmem_to_hbm [thread:$0]  %s1097, 128, %s1099, %s1083
        $region68: #{tpu_custom_call.1} parent=59 // pred_fallthru
          _
      $region60: #{tpu_custom_call.1} parent=5 // pred_fallthru
        _
      %p1102 = scmp.le.s32.totalorder 2, %s19
      // Predicated region
      $region69: #{tpu_custom_call.1} parent=5 // pred_check
        %p1103 = pneg %p1102
      $region70: #{tpu_custom_call.1} parent=5 // pred_check_branch
        %1105 = sbr.rel (%p1103) target = $region72
      $region71: #{tpu_custom_call.1} parent=5 // pred_region
        %s1106 = ssub.s32 %s19, 2
        // Predicated region
        $region73: #{tpu_custom_call.1} parent=71 // pred_check
          %p1107 = pneg %p284
        $region74: #{tpu_custom_call.1} parent=71 // pred_check_branch
          %1109 = sbr.rel (%p1107) target = $region76
        $region75: #{tpu_custom_call.1} parent=71 // pred_region
          %s1110 = sand.u32 %s269, 1
          %s1111 = scalar_lea.sflag [#allocation7], %s1110
          %s1112 = sand.u32 %s269, 1
          %s1113 = smul.addr %s1112, 8
          %s1114 = scalar_lea.vmem [#allocation6], %s1113
          %1116 = dma.done %s1111, 128
        $region76: #{tpu_custom_call.1} parent=71 // pred_fallthru
          _
      $region72: #{tpu_custom_call.1} parent=5 // pred_fallthru
        _
    $region6: #{tpu_custom_call.1} parent=1 // loop_footer
      %s23 = sadd.s32 1, %s19
    $region7: #{tpu_custom_call.1} parent=1 // loop_footer_branch
      %18 = sbr.rel target = $region3
    $region8: #{tpu_custom_call.1} parent=1 // loop_exit
      _
    %1117 = vsyncpa [#allocation7], 1
    %s1118 = scalar_lea.sflag [#allocation7], 1
    %1119 = vsyncpa %s1118, 1

// kernel: tpu_custom_call.1
$region0: #{tpu_custom_call.1}
  #allocation0 [shape = 'u32[]', space=smem, size = 0x4, offset = 0x4, fixed_abs, tag = 'smem constant byte address 0x4 - core index']
  #allocation1 [shape = 'u32[72,128]{1,0:T(1,128)}', space=vmem, size = 0x9000, scoped, tag = 'internal scratch']
  #allocation2 [shape = 'bf16[8,128]{1,0:T(8,128)(2,1)}', space=vmem, size = 0x800, scoped, tag = 'scratch operand']
  #allocation3 [shape = 'bf16[8,128]{1,0:T(8,128)(2,1)}', space=vmem, size = 0x800, scoped, tag = 'scratch operand']
  #allocation4 [shape = 'bf16[32,128]{1,0:T(8,128)(2,1)}', space=vmem, size = 0x2000, scoped, tag = 'scratch operand']
  #allocation5 [shape = 'bf16[8,512]{1,0:T(8,128)(2,1)}', space=vmem, size = 0x2000, scoped, tag = 'scratch operand']
  %s0 = inlined_call_operand.vmem [shape: bf16[2,8,32], index: 0, kind: input, shape index: {}]
  %s1 = inlined_call_operand.vmem [shape: bf16[2,8,32], index: 1, kind: input, shape index: {}]
  %s2 = inlined_call_operand.vmem [shape: bf16[32,512], index: 2, kind: input, shape index: {}]
  %s3 = inlined_call_operand.vmem [shape: f32[1,512], index: 3, kind: input, shape index: {}]
  %s4 = inlined_call_operand.vmem [shape: bf16[32,128], index: 4, kind: input, shape index: {}]
  %s5 = inlined_call_operand.vmem [shape: f32[1,128], index: 5, kind: input, shape index: {}]
  %s6 = inlined_call_operand.vmem [shape: bf16[32,128], index: 6, kind: input, shape index: {}]
  %s7 = inlined_call_operand.vmem [shape: f32[1,128], index: 7, kind: input, shape index: {}]
  %s8 = inlined_call_operand.vmem [shape: bf16[512,32], index: 8, kind: input, shape index: {}]
  %s9 = inlined_call_operand.vmem [shape: f32[1,32], index: 9, kind: input, shape index: {}]
  %s10 = inlined_call_operand.hbm [shape: f32[2,8,32], index: 10, kind: output, shape index: {}]
  %s11 = sld [smem:[#allocation0]]
  $region77: #{tpu_custom_call.1} parent=0
    _
  %s13 = ssub.s32 1, %s11
  %s14 = scalar_select 0, %s13, %s11
  $region1: #{tpu_custom_call.1} parent=0
    #allocation6 [shape = 'u8[8192]{0}', space=vmem, size = 0x2000, scoped, tag = 'output window, operand 0']
    #allocation7 [shape = 's32[2]{0}', space=sflag, size = 0x8, scoped, tag = 'scoped memory for tpu_custom_call.1']
    %15 = vsyncpa [#allocation7], 0
    %s16 = scalar_lea.sflag [#allocation7], 1
    %17 = vsyncpa %s16, 0
    loop: start=0, step=1, limit=4
    $region2: #{tpu_custom_call.1} parent=1 // loop_pre_header
      _
    $region3: #{tpu_custom_call.1} parent=1 // loop_header
      %s19 = sphi 0, %s23
      %p20 = scmp.ge.s32.totalorder %s19, 4
      %s26 = sphi 0, %s38
      %s27 = sphi 0, %s34
      %s28 = sphi 0, %s26
      %s29 = sphi 0, %s27
      %s30 = sphi 0, %s28
      %s31 = sphi 0, %s29
      %s43 = sphi 0, %s45
      %s46 = sphi 0, %s43
      %s47 = sphi 0, %s46
      %s63 = sphi 0, %s47
      %s69 = sphi 0, %s71
      %s72 = sphi 0, %s69
      %s73 = sphi 0, %s72
      %s89 = sphi 0, %s73
      %s93 = sphi 0, %s93
      %s95 = sphi 0, %s93
      %s96 = sphi 0, %s95
      %s110 = sphi 0, %s96
      %s114 = sphi 0, %s114
      %s116 = sphi 0, %s114
      %s117 = sphi 0, %s116
      %s131 = sphi 0, %s117
      %s135 = sphi 0, %s135
      %s137 = sphi 0, %s135
      %s138 = sphi 0, %s137
      %s152 = sphi 0, %s138
      %s156 = sphi 0, %s156
      %s158 = sphi 0, %s156
      %s159 = sphi 0, %s158
      %s173 = sphi 0, %s159
      %s177 = sphi 0, %s177
      %s179 = sphi 0, %s177
      %s180 = sphi 0, %s179
      %s194 = sphi 0, %s180
      %s198 = sphi 0, %s198
      %s200 = sphi 0, %s198
      %s201 = sphi 0, %s200
      %s215 = sphi 0, %s201
      %s219 = sphi 0, %s219
      %s221 = sphi 0, %s219
      %s222 = sphi 0, %s221
      %s236 = sphi 0, %s222
      %s240 = sphi 0, %s240
      %s242 = sphi 0, %s240
      %s243 = sphi 0, %s242
      %s257 = sphi 0, %s243
      %s265 = sphi 0, %s267
      %s268 = sphi 0, %s265
      %s269 = sphi 0, %s268
      %s285 = sphi 0, %s269
    $region4: #{tpu_custom_call.1} parent=1 // loop_header_branch
      %22 = sbr.rel (%p20) target = $region8
    $region5: #{tpu_custom_call.1} parent=1 // loop_body
      %s24 = ssub.s32 %s19, 1
      %s25 = ssub.s32 %s19, 2
      %s32 = sadd.s32 1, %s27
      %p33 = scmp.ge.s32.totalorder %s32, 1
      %s34 = scalar_select %p33, 0, %s32
      %s35 = sadd.s32 1, %s26
      %s36 = scalar_select %p33, %s35, %s26
      %p37 = scmp.ge.s32.totalorder %s36, 2
      %s38 = scalar_select %p37, 0, %s36
      %s39 = ssub.s32 %s26, %s38
      %s40 = ssub.s32 %s27, %s34
      %s41 = sor.u32 %s39, %s40
      %p42 = scmp.eq.s32.totalorder %s41, 0
      %s44 = sadd.s32 %s43, 1
      %s45 = scalar_select %p42, %s43, %s44
      %p48 = pneg %p42
      %p49 = scmp.eq.s32.totalorder %s19, 1
      %p50 = por %p48, %p49
      %p51 = scmp.ne.s32.totalorder %s43, %s46
      %p52 = scmp.eq.s32.totalorder %s19, 0
      %p53 = por %p51, %p52
      %p54 = scmp.ne.s32.totalorder %s43, %s46
      %p55 = scmp.eq.s32.totalorder %s24, 1
      %p56 = por %p54, %p55
      %p57 = scmp.ne.s32.totalorder %s46, %s47
      %p58 = scmp.eq.s32.totalorder %s24, 0
      %p59 = por %p57, %p58
      %p60 = scmp.ne.s32.totalorder %s46, %s47
      %p61 = scmp.eq.s32.totalorder %s25, 1
      %p62 = por %p60, %p61
      %p64 = scmp.ne.s32.totalorder %s47, %s63
      %p65 = scmp.eq.s32.totalorder %s25, 0
      %p66 = por %p64, %p65
      %s67 = ssub.s32 %s26, %s38
      %p68 = scmp.eq.s32.totalorder %s67, 0
      %s70 = sadd.s32 %s69, 1
      %s71 = scalar_select %p68, %s69, %s70
      %p74 = pneg %p68
      %p75 = scmp.eq.s32.totalorder %s19, 1
      %p76 = por %p74, %p75
      %p77 = scmp.ne.s32.totalorder %s69, %s72
      %p78 = scmp.eq.s32.totalorder %s19, 0
      %p79 = por %p77, %p78
      %p80 = scmp.ne.s32.totalorder %s69, %s72
      %p81 = scmp.eq.s32.totalorder %s24, 1
      %p82 = por %p80, %p81
      %p83 = scmp.ne.s32.totalorder %s72, %s73
      %p84 = scmp.eq.s32.totalorder %s24, 0
      %p85 = por %p83, %p84
      %p86 = scmp.ne.s32.totalorder %s72, %s73
      %p87 = scmp.eq.s32.totalorder %s25, 1
      %p88 = por %p86, %p87
      %p90 = scmp.ne.s32.totalorder %s73, %s89
      %p91 = scmp.eq.s32.totalorder %s25, 0
      %p92 = por %p90, %p91
      %s94 = sadd.s32 %s93, 1
      %p97 = scmp.eq.s32.totalorder %s19, 1
      %p98 = scmp.ne.s32.totalorder %s93, %s95
      %p99 = scmp.eq.s32.totalorder %s19, 0
      %p100 = por %p98, %p99
      %p101 = scmp.ne.s32.totalorder %s93, %s95
      %p102 = scmp.eq.s32.totalorder %s24, 1
      %p103 = por %p101, %p102
      %p104 = scmp.ne.s32.totalorder %s95, %s96
      %p105 = scmp.eq.s32.totalorder %s24, 0
      %p106 = por %p104, %p105
      %p107 = scmp.ne.s32.totalorder %s95, %s96
      %p108 = scmp.eq.s32.totalorder %s25, 1
      %p109 = por %p107, %p108
      %p111 = scmp.ne.s32.totalorder %s96, %s110
      %p112 = scmp.eq.s32.totalorder %s25, 0
      %p113 = por %p111, %p112
      %s115 = sadd.s32 %s114, 1
      %p118 = scmp.eq.s32.totalorder %s19, 1
      %p119 = scmp.ne.s32.totalorder %s114, %s116
      %p120 = scmp.eq.s32.totalorder %s19, 0
      %p121 = por %p119, %p120
      %p122 = scmp.ne.s32.totalorder %s114, %s116
      %p123 = scmp.eq.s32.totalorder %s24, 1
      %p124 = por %p122, %p123
      %p125 = scmp.ne.s32.totalorder %s116, %s117
      %p126 = scmp.eq.s32.totalorder %s24, 0
      %p127 = por %p125, %p126
      %p128 = scmp.ne.s32.totalorder %s116, %s117
      %p129 = scmp.eq.s32.totalorder %s25, 1
      %p130 = por %p128, %p129
      %p132 = scmp.ne.s32.totalorder %s117, %s131
      %p133 = scmp.eq.s32.totalorder %s25, 0
      %p134 = por %p132, %p133
      %s136 = sadd.s32 %s135, 1
      %p139 = scmp.eq.s32.totalorder %s19, 1
      %p140 = scmp.ne.s32.totalorder %s135, %s137
      %p141 = scmp.eq.s32.totalorder %s19, 0
      %p142 = por %p140, %p141
      %p143 = scmp.ne.s32.totalorder %s135, %s137
      %p144 = scmp.eq.s32.totalorder %s24, 1
      %p145 = por %p143, %p144
      %p146 = scmp.ne.s32.totalorder %s137, %s138
      %p147 = scmp.eq.s32.totalorder %s24, 0
      %p148 = por %p146, %p147
      %p149 = scmp.ne.s32.totalorder %s137, %s138
      %p150 = scmp.eq.s32.totalorder %s25, 1
      %p151 = por %p149, %p150
      %p153 = scmp.ne.s32.totalorder %s138, %s152
      %p154 = scmp.eq.s32.totalorder %s25, 0
      %p155 = por %p153, %p154
      %s157 = sadd.s32 %s156, 1
      %p160 = scmp.eq.s32.totalorder %s19, 1
      %p161 = scmp.ne.s32.totalorder %s156, %s158
      %p162 = scmp.eq.s32.totalorder %s19, 0
      %p163 = por %p161, %p162
      %p164 = scmp.ne.s32.totalorder %s156, %s158
      %p165 = scmp.eq.s32.totalorder %s24, 1
      %p166 = por %p164, %p165
      %p167 = scmp.ne.s32.totalorder %s158, %s159
      %p168 = scmp.eq.s32.totalorder %s24, 0
      %p169 = por %p167, %p168
      %p170 = scmp.ne.s32.totalorder %s158, %s159
      %p171 = scmp.eq.s32.totalorder %s25, 1
      %p172 = por %p170, %p171
      %p174 = scmp.ne.s32.totalorder %s159, %s173
      %p175 = scmp.eq.s32.totalorder %s25, 0
      %p176 = por %p174, %p175
      %s178 = sadd.s32 %s177, 1
      %p181 = scmp.eq.s32.totalorder %s19, 1
      %p182 = scmp.ne.s32.totalorder %s177, %s179
      %p183 = scmp.eq.s32.totalorder %s19, 0
      %p184 = por %p182, %p183
      %p185 = scmp.ne.s32.totalorder %s177, %s179
      %p186 = scmp.eq.s32.totalorder %s24, 1
      %p187 = por %p185, %p186
      %p188 = scmp.ne.s32.totalorder %s179, %s180
      %p189 = scmp.eq.s32.totalorder %s24, 0
      %p190 = por %p188, %p189
      %p191 = scmp.ne.s32.totalorder %s179, %s180
      %p192 = scmp.eq.s32.totalorder %s25, 1
      %p193 = por %p191, %p192
      %p195 = scmp.ne.s32.totalorder %s180, %s194
      %p196 = scmp.eq.s32.totalorder %s25, 0
      %p197 = por %p195, %p196
      %s199 = sadd.s32 %s198, 1
      %p202 = scmp.eq.s32.totalorder %s19, 1
      %p203 = scmp.ne.s32.totalorder %s198, %s200
      %p204 = scmp.eq.s32.totalorder %s19, 0
      %p205 = por %p203, %p204
      %p206 = scmp.ne.s32.totalorder %s198, %s200
      %p207 = scmp.eq.s32.totalorder %s24, 1
      %p208 = por %p206, %p207
      %p209 = scmp.ne.s32.totalorder %s200, %s201
      %p210 = scmp.eq.s32.totalorder %s24, 0
      %p211 = por %p209, %p210
      %p212 = scmp.ne.s32.totalorder %s200, %s201
      %p213 = scmp.eq.s32.totalorder %s25, 1
      %p214 = por %p212, %p213
      %p216 = scmp.ne.s32.totalorder %s201, %s215
      %p217 = scmp.eq.s32.totalorder %s25, 0
      %p218 = por %p216, %p217
      %s220 = sadd.s32 %s219, 1
      %p223 = scmp.eq.s32.totalorder %s19, 1
      %p224 = scmp.ne.s32.totalorder %s219, %s221
      %p225 = scmp.eq.s32.totalorder %s19, 0
      %p226 = por %p224, %p225
      %p227 = scmp.ne.s32.totalorder %s219, %s221
      %p228 = scmp.eq.s32.totalorder %s24, 1
      %p229 = por %p227, %p228
      %p230 = scmp.ne.s32.totalorder %s221, %s222
      %p231 = scmp.eq.s32.totalorder %s24, 0
      %p232 = por %p230, %p231
      %p233 = scmp.ne.s32.totalorder %s221, %s222
      %p234 = scmp.eq.s32.totalorder %s25, 1
      %p235 = por %p233, %p234
      %p237 = scmp.ne.s32.totalorder %s222, %s236
      %p238 = scmp.eq.s32.totalorder %s25, 0
      %p239 = por %p237, %p238
      %s241 = sadd.s32 %s240, 1
      %p244 = scmp.eq.s32.totalorder %s19, 1
      %p245 = scmp.ne.s32.totalorder %s240, %s242
      %p246 = scmp.eq.s32.totalorder %s19, 0
      %p247 = por %p245, %p246
      %p248 = scmp.ne.s32.totalorder %s240, %s242
      %p249 = scmp.eq.s32.totalorder %s24, 1
      %p250 = por %p248, %p249
      %p251 = scmp.ne.s32.totalorder %s242, %s243
      %p252 = scmp.eq.s32.totalorder %s24, 0
      %p253 = por %p251, %p252
      %p254 = scmp.ne.s32.totalorder %s242, %s243
      %p255 = scmp.eq.s32.totalorder %s25, 1
      %p256 = por %p254, %p255
      %p258 = scmp.ne.s32.totalorder %s243, %s257
      %p259 = scmp.eq.s32.totalorder %s25, 0
      %p260 = por %p258, %p259
      %s261 = ssub.s32 %s26, %s38
      %s262 = ssub.s32 %s27, %s34
      %s263 = sor.u32 %s261, %s262
      %p264 = scmp.eq.s32.totalorder %s263, 0
      %s266 = sadd.s32 %s265, 1
      %s267 = scalar_select %p264, %s265, %s266
      %p270 = pneg %p264
      %p271 = scmp.eq.s32.totalorder %s19, 1
      %p272 = por %p270, %p271
      %p273 = scmp.ne.s32.totalorder %s265, %s268
      %p274 = scmp.eq.s32.totalorder %s19, 0
      %p275 = por %p273, %p274
      %p276 = scmp.ne.s32.totalorder %s265, %s268
      %p277 = scmp.eq.s32.totalorder %s24, 1
      %p278 = por %p276, %p277
      %p279 = scmp.ne.s32.totalorder %s268, %s269
      %p280 = scmp.eq.s32.totalorder %s24, 0
      %p281 = por %p279, %p280
      %p282 = scmp.ne.s32.totalorder %s268, %s269
      %p283 = scmp.eq.s32.totalorder %s25, 1
      %p284 = por %p282, %p283
      %p286 = scmp.ne.s32.totalorder %s269, %s285
      %p287 = scmp.eq.s32.totalorder %s25, 0
      %p288 = por %p286, %p287
      %p289 = scmp.le.s32.totalorder 1, %s19
      %p290 = scmp.lt.s32.totalorder %s19, 3
      %p291 = pnand %p289, %p290
      %p292 = pneg %p291
      // Predicated region
      $region9: #{tpu_custom_call.1} parent=5 // pred_check
        _
      $region10: #{tpu_custom_call.1} parent=5 // pred_check_branch
        %294 = sbr.rel (%p291) target = $region12
      $region11: #{tpu_custom_call.1} parent=5 // pred_region
        %s295 = ssub.s32 %s19, 1
        // Predicated region
        $region13: #{tpu_custom_call.1} parent=11 // pred_check
          %p296 = pneg %p106
        $region14: #{tpu_custom_call.1} parent=11 // pred_check_branch
          %298 = sbr.rel (%p296) target = $region16
        $region15: #{tpu_custom_call.1} parent=11 // pred_region
          _
        $region16: #{tpu_custom_call.1} parent=11 // pred_fallthru
          _
        // Predicated region
        $region17: #{tpu_custom_call.1} parent=11 // pred_check
          %p299 = pneg %p127
        $region18: #{tpu_custom_call.1} parent=11 // pred_check_branch
          %301 = sbr.rel (%p299) target = $region20
        $region19: #{tpu_custom_call.1} parent=11 // pred_region
          _
        $region20: #{tpu_custom_call.1} parent=11 // pred_fallthru
          _
        // Predicated region
        $region21: #{tpu_custom_call.1} parent=11 // pred_check
          %p302 = pneg %p148
        $region22: #{tpu_custom_call.1} parent=11 // pred_check_branch
          %304 = sbr.rel (%p302) target = $region24
        $region23: #{tpu_custom_call.1} parent=11 // pred_region
          _
        $region24: #{tpu_custom_call.1} parent=11 // pred_fallthru
          _
        // Predicated region
        $region25: #{tpu_custom_call.1} parent=11 // pred_check
          %p305 = pneg %p169
        $region26: #{tpu_custom_call.1} parent=11 // pred_check_branch
          %307 = sbr.rel (%p305) target = $region28
        $region27: #{tpu_custom_call.1} parent=11 // pred_region
          _
        $region28: #{tpu_custom_call.1} parent=11 // pred_fallthru
          _
        // Predicated region
        $region29: #{tpu_custom_call.1} parent=11 // pred_check
          %p308 = pneg %p190
        $region30: #{tpu_custom_call.1} parent=11 // pred_check_branch
          %310 = sbr.rel (%p308) target = $region32
        $region31: #{tpu_custom_call.1} parent=11 // pred_region
          _
        $region32: #{tpu_custom_call.1} parent=11 // pred_fallthru
          _
        // Predicated region
        $region33: #{tpu_custom_call.1} parent=11 // pred_check
          %p311 = pneg %p211
        $region34: #{tpu_custom_call.1} parent=11 // pred_check_branch
          %313 = sbr.rel (%p311) target = $region36
        $region35: #{tpu_custom_call.1} parent=11 // pred_region
          _
        $region36: #{tpu_custom_call.1} parent=11 // pred_fallthru
          _
        // Predicated region
        $region37: #{tpu_custom_call.1} parent=11 // pred_check
          %p314 = pneg %p232
        $region38: #{tpu_custom_call.1} parent=11 // pred_check_branch
          %316 = sbr.rel (%p314) target = $region40
        $region39: #{tpu_custom_call.1} parent=11 // pred_region
          _
        $region40: #{tpu_custom_call.1} parent=11 // pred_fallthru
          _
        // Predicated region
        $region41: #{tpu_custom_call.1} parent=11 // pred_check
          %p317 = pneg %p253
        $region42: #{tpu_custom_call.1} parent=11 // pred_check_branch
          %319 = sbr.rel (%p317) target = $region44
        $region43: #{tpu_custom_call.1} parent=11 // pred_region
          _
        $region44: #{tpu_custom_call.1} parent=11 // pred_fallthru
          _
      $region12: #{tpu_custom_call.1} parent=5 // pred_fallthru
        _
      %p320 = scmp.lt.s32.totalorder %s19, 2
      // Predicated region
      $region45: #{tpu_custom_call.1} parent=5 // pred_check
        %p321 = pneg %p320
      $region46: #{tpu_custom_call.1} parent=5 // pred_check_branch
        %323 = sbr.rel (%p321) target = $region48
      $region47: #{tpu_custom_call.1} parent=5 // pred_region
        // Predicated region
        $region49: #{tpu_custom_call.1} parent=47 // pred_check
          %p324 = pneg %p53
        $region50: #{tpu_custom_call.1} parent=47 // pred_check_branch
          %326 = sbr.rel (%p324) target = $region52
        $region51: #{tpu_custom_call.1} parent=47 // pred_region
          %p327 = scmp.lt.s32.totalorder %s26, 1
          %s328 = scalar_select %p327, %s26, 1
          %p329 = scmp.lt.s32.totalorder %s27, 0
          %s330 = scalar_select %p329, %s27, 0
          %s331 = sadd.s32 %s330, %s328
          %s332 = smul.addr %s331, 4
          %s333 = scalar_lea.vmem %s0, %s332
        $region52: #{tpu_custom_call.1} parent=47 // pred_fallthru
          _
        // Predicated region
        $region53: #{tpu_custom_call.1} parent=47 // pred_check
          %p334 = pneg %p79
        $region54: #{tpu_custom_call.1} parent=47 // pred_check_branch
          %336 = sbr.rel (%p334) target = $region56
        $region55: #{tpu_custom_call.1} parent=47 // pred_region
          %p337 = scmp.lt.s32.totalorder %s26, 1
          %s338 = scalar_select %p337, %s26, 1
          %s339 = smul.addr %s338, 4
          %s340 = scalar_lea.vmem %s1, %s339
        $region56: #{tpu_custom_call.1} parent=47 // pred_fallthru
          _
      $region48: #{tpu_custom_call.1} parent=5 // pred_fallthru
        _
      %p341 = scmp.le.s32.totalorder 1, %s19
      %p342 = scmp.lt.s32.totalorder %s19, 3
      %p343 = pnand %p341, %p342
      %p344 = pneg %p343
      // Predicated region
      $region57: #{tpu_custom_call.1} parent=5 // pred_check
        _
      $region58: #{tpu_custom_call.1} parent=5 // pred_check_branch
        %346 = sbr.rel (%p343) target = $region60
      $region59: #{tpu_custom_call.1} parent=5 // pred_region
        %s347 = ssub.s32 %s19, 1
        %p348 = scmp.lt.s32.totalorder %s28, 1
        %s349 = scalar_select %p348, %s28, 1
        %p350 = scmp.lt.s32.totalorder %s29, 0
        %s351 = scalar_select %p350, %s29, 0
        %s352 = sadd.s32 %s351, %s349
        %s353 = smul.addr %s352, 4
        %s354 = scalar_lea.vmem %s0, %s353
        %p355 = pneg %p59
        %p356 = pneg %p56
        %p357 = scmp.lt.s32.totalorder %s28, 1
        %s358 = scalar_select %p357, %s28, 1
        %s359 = smul.addr %s358, 4
        %s360 = scalar_lea.vmem %s1, %s359
        %p361 = pneg %p85
        %p362 = pneg %p82
        %p363 = pneg %p106
        %p364 = pneg %p103
        %p365 = pneg %p127
        %p366 = pneg %p124
        %p367 = pneg %p148
        %p368 = pneg %p145
        %p369 = pneg %p169
        %p370 = pneg %p166
        %p371 = pneg %p190
        %p372 = pneg %p187
        %p373 = pneg %p211
        %p374 = pneg %p208
        %p375 = pneg %p232
        %p376 = pneg %p229
        %p377 = pneg %p253
        %p378 = pneg %p250
        %p379 = pneg %p281
        %p380 = pneg %p278
        %s381 = sand.u32 %s268, 1
        %s382 = scalar_lea.sflag [#allocation7], %s381
        %s383 = sand.u32 %s268, 1
        %s384 = smul.addr %s383, 8
        %s385 = scalar_lea.vmem [#allocation6], %s384
        %p386 = scmp.lt.s32.totalorder %s28, 1
        %s387 = scalar_select %p386, %s28, 1
        %p388 = scmp.lt.s32.totalorder %s29, 0
        %s389 = scalar_select %p388, %s29, 0
        %s390 = sadd.s32 %s389, %s387
        %s391 = smul.addr %s390, 4
        %s392 = scalar_lea.vmem %s0, %s391
        %p393 = scmp.lt.s32.totalorder %s28, 1
        %s394 = scalar_select %p393, %s28, 1
        %s395 = smul.addr %s394, 4
        %s396 = scalar_lea.vmem %s1, %s395
        %p398 = scmp.eq.s32.totalorder %s29, 0
        // Predicated region
        $region61: #{tpu_custom_call.1} parent=59 // pred_check
          %p399 = pneg %p398
        $region62: #{tpu_custom_call.1} parent=59 // pred_check_branch
          %401 = sbr.rel (%p399) target = $region64
        $region63: #{tpu_custom_call.1} parent=59 // pred_region
          %v402 = vld [vmem:[%s396] sm:$0xf]
          %v403 = vld [vmem:[%s4] sm:$0xf]
          %v404 = vld [vmem:[%s4 + $0x4] sm:$0xf]
          %v405 = vld [vmem:[%s4 + $0x8] sm:$0xf]
          %v406 = vld [vmem:[%s4 + $0xc] sm:$0xf]
          %v407 = vld [vmem:[%s5] sm:$0x1]
          %v409 = vperm.slane %v407, 0
          %v415 = vunpack.c.l.b16 %v403
          %v416 = vunpack.c.l.b16 %v404
          %v417 = vunpack.c.l.b16 %v405
          %v418 = vunpack.c.l.b16 %v406
          %v419 = vpack.c.b16 %v416, %v415
          %v420 = vpack.c.b16 %v418, %v417
          %vm423 = vcmask 261120
          %v425 = vsel %vm423, %v402, 0
          %427 = vmatpush.bf16.msra.mxu0 0
          %428 = vmatpush.bf16.msra.mxu0 0
          %429 = vmatpush.bf16.msra.mxu0 0
          %430 = vmatpush.bf16.msra.mxu0 0
          %431 = vmatpush.bf16.msra.mxu0 0
          %432 = vmatpush.bf16.msra.mxu0 0
          %433 = vmatpush.bf16.msra.mxu0 %v420
          %434 = vmatpush.bf16.msra.mxu0 %v419
          %435 = vmatmul.bf16.gmra.mxu0 %v425
          %v436 = vpop.f32.mrf.mxu0
          %v437 = vadd.f32 %v409, %v436
          %v438 = vpop.f32.mrf.mxu0
          %439 = vdwg.mxu0
          %v440 = vld [vmem:[%s6] sm:$0xf]
          %v441 = vld [vmem:[%s6 + $0x4] sm:$0xf]
          %v442 = vld [vmem:[%s6 + $0x8] sm:$0xf]
          %v443 = vld [vmem:[%s6 + $0xc] sm:$0xf]
          %v444 = vld [vmem:[%s7] sm:$0x1]
          %v446 = vperm.slane %v444, 0
          %v452 = vunpack.c.l.b16 %v440
          %v453 = vunpack.c.l.b16 %v441
          %v454 = vunpack.c.l.b16 %v442
          %v455 = vunpack.c.l.b16 %v443
          %v456 = vpack.c.b16 %v453, %v452
          %v457 = vpack.c.b16 %v455, %v454
          %460 = vmatpush.bf16.msra.mxu0 0
          %461 = vmatpush.bf16.msra.mxu0 0
          %462 = vmatpush.bf16.msra.mxu0 0
          %463 = vmatpush.bf16.msra.mxu0 0
          %464 = vmatpush.bf16.msra.mxu0 0
          %465 = vmatpush.bf16.msra.mxu0 0
          %466 = vmatpush.bf16.msra.mxu0 %v457
          %467 = vmatpush.bf16.msra.mxu0 %v456
          %468 = vmatmul.bf16.gmra.mxu0 %v425
          %v469 = vpop.f32.mrf.mxu0
          %v470 = vadd.f32 %v446, %v469
          %v471 = vpop.f32.mrf.mxu0
          %472 = vdwg.mxu0
          %v473 = vpack.c.bf16 %v437, %v437
          %474 = vst [vmem:[#allocation2] sm:$0xf] %v473
          %v475 = vpack.c.bf16 %v470, %v470
          %476 = vst [vmem:[#allocation3] sm:$0xf] %v475
        $region64: #{tpu_custom_call.1} parent=59 // pred_fallthru
          _
        %v477 = vld [vmem:[%s392] sm:$0xf]
        %v478 = vld [vmem:[%s2] sm:$0xff]
        %v479 = vld [vmem:[%s2 + $0x8] sm:$0xff]
        %v480 = vld [vmem:[%s2 + $0x10] sm:$0xff]
        %v481 = vld [vmem:[%s2 + $0x18] sm:$0xff]
        %v482 = vld [vmem:[%s2 + $0x20] sm:$0xff]
        %v483 = vld [vmem:[%s2 + $0x28] sm:$0xff]
        %v484 = vld [vmem:[%s2 + $0x30] sm:$0xff]
        %v485 = vld [vmem:[%s2 + $0x38] sm:$0xff]
        %v486 = vld [vmem:[%s3] sm:$0xf]
        %v488 = vperm.slane %v486, 0
        %v489 = vperm.slane %v486, 1
        %v490 = vperm.slane %v486, 2
        %v491 = vperm.slane %v486, 3
        %v504 = vunpack.c.l.b16 %v478
        %v505 = vunpack.c.h.b16 %v478
        %v506 = vunpack.c.l.b16 %v479
        %v507 = vunpack.c.h.b16 %v479
        %v508 = vunpack.c.l.b16 %v480
        %v509 = vunpack.c.h.b16 %v480
        %v510 = vunpack.c.l.b16 %v481
        %v511 = vunpack.c.h.b16 %v481
        %v512 = vunpack.c.l.b16 %v482
        %v513 = vunpack.c.h.b16 %v482
        %v514 = vunpack.c.l.b16 %v483
        %v515 = vunpack.c.h.b16 %v483
        %v516 = vunpack.c.l.b16 %v484
        %v517 = vunpack.c.h.b16 %v484
        %v518 = vunpack.c.l.b16 %v485
        %v519 = vunpack.c.h.b16 %v485
        %v520 = vpack.c.b16 %v508, %v504
        %v521 = vpack.c.b16 %v509, %v505
        %v522 = vpack.c.b16 %v510, %v506
        %v523 = vpack.c.b16 %v511, %v507
        %v524 = vpack.c.b16 %v516, %v512
        %v525 = vpack.c.b16 %v517, %v513
        %v526 = vpack.c.b16 %v518, %v514
        %v527 = vpack.c.b16 %v519, %v515
        %vm536 = vcmask 261120
        %v538 = vsel %vm536, %v477, 0
        %540 = vmatpush.bf16.msra.mxu0 0
        %541 = vmatpush.bf16.msra.mxu0 0
        %542 = vmatpush.bf16.msra.mxu0 0
        %543 = vmatpush.bf16.msra.mxu0 0
        %544 = vmatpush.bf16.msra.mxu0 0
        %545 = vmatpush.bf16.msra.mxu0 0
        %546 = vmatpush.bf16.msra.mxu0 %v524
        %547 = vmatpush.bf16.msra.mxu0 %v520
        %548 = vmatmul.bf16.gmra.mxu0 %v538
        %v549 = vpop.f32.mrf.mxu0
        %v550 = vadd.f32 %v488, %v549
        %v551 = vpop.f32.mrf.mxu0
        %552 = vdwg.mxu0
        %553 = vmatpush.bf16.msra.mxu0 0
        %554 = vmatpush.bf16.msra.mxu0 0
        %555 = vmatpush.bf16.msra.mxu0 0
        %556 = vmatpush.bf16.msra.mxu0 0
        %557 = vmatpush.bf16.msra.mxu0 0
        %558 = vmatpush.bf16.msra.mxu0 0
        %559 = vmatpush.bf16.msra.mxu0 %v525
        %560 = vmatpush.bf16.msra.mxu0 %v521
        %561 = vmatmul.bf16.gmra.mxu0 %v538
        %v562 = vpop.f32.mrf.mxu0
        %v563 = vadd.f32 %v489, %v562
        %v564 = vpop.f32.mrf.mxu0
        %565 = vdwg.mxu0
        %566 = vmatpush.bf16.msra.mxu0 0
        %567 = vmatpush.bf16.msra.mxu0 0
        %568 = vmatpush.bf16.msra.mxu0 0
        %569 = vmatpush.bf16.msra.mxu0 0
        %570 = vmatpush.bf16.msra.mxu0 0
        %571 = vmatpush.bf16.msra.mxu0 0
        %572 = vmatpush.bf16.msra.mxu0 %v526
        %573 = vmatpush.bf16.msra.mxu0 %v522
        %574 = vmatmul.bf16.gmra.mxu0 %v538
        %v575 = vpop.f32.mrf.mxu0
        %v576 = vadd.f32 %v490, %v575
        %v577 = vpop.f32.mrf.mxu0
        %578 = vdwg.mxu0
        %579 = vmatpush.bf16.msra.mxu0 0
        %580 = vmatpush.bf16.msra.mxu0 0
        %581 = vmatpush.bf16.msra.mxu0 0
        %582 = vmatpush.bf16.msra.mxu0 0
        %583 = vmatpush.bf16.msra.mxu0 0
        %584 = vmatpush.bf16.msra.mxu0 0
        %585 = vmatpush.bf16.msra.mxu0 %v527
        %586 = vmatpush.bf16.msra.mxu0 %v523
        %587 = vmatmul.bf16.gmra.mxu0 %v538
        %v588 = vpop.f32.mrf.mxu0
        %v589 = vadd.f32 %v491, %v588
        %v590 = vpop.f32.mrf.mxu0
        %591 = vdwg.mxu0
        %v592 = vmul.f32 %v550, 0.35355338
        %v593 = vmul.f32 %v563, 0.35355338
        %v594 = vmul.f32 %v576, 0.35355338
        %v595 = vmul.f32 %v589, 0.35355338
        %v596 = vpack.c.bf16 %v593, %v592
        %v597 = vpack.c.bf16 %v595, %v594
        %598 = vst [vmem:[#allocation4] sm:$0xf] %v596
        %v600 = vrot.slane %v596, 4
        %602 = vst [vmem:[#allocation4 + $0x4] sm:$0xf] %v600
        %603 = vst [vmem:[#allocation4 + $0x8] sm:$0xf] %v597
        %v605 = vrot.slane %v597, 4
        %607 = vst [vmem:[#allocation4 + $0xc] sm:$0xf] %v605
        %v608 = vld [vmem:[#allocation4] sm:$0xf]
        %v609 = vld [vmem:[#allocation4 + $0x4] sm:$0xf]
        %v610 = vld [vmem:[#allocation4 + $0x8] sm:$0xf]
        %v611 = vld [vmem:[#allocation4 + $0xc] sm:$0xf]
        %v612 = vld [vmem:[#allocation2] sm:$0xf]
        %v613 = vld [vmem:[#allocation3] sm:$0xf]
        %v618 = vunpack.c.l.b16 %v608
        %v619 = vunpack.c.l.b16 %v609
        %v620 = vunpack.c.l.b16 %v610
        %v621 = vunpack.c.l.b16 %v611
        %v622 = vpack.c.b16 %v619, %v618
        %v623 = vpack.c.b16 %v621, %v620
        %626 = vmatpush.bf16.xpose.msra.mxu0 0
        %627 = vmatpush.bf16.xpose.msra.mxu0 0
        %628 = vmatpush.bf16.xpose.msra.mxu0 0
        %629 = vmatpush.bf16.xpose.msra.mxu0 0
        %630 = vmatpush.bf16.xpose.msra.mxu0 0
        %631 = vmatpush.bf16.xpose.msra.mxu0 0
        %632 = vmatpush.bf16.xpose.msra.mxu0 0
        %633 = vmatpush.bf16.xpose.msra.mxu0 %v612
        %634 = vmatmul.bf16.gmra.mxu0 %v622
        %v635 = vpop.f32.mrf.mxu0
        %v636 = vadd.f32 0.0, %v635
        %v637 = vpop.f32.mrf.mxu0
        %v638 = vadd.f32 0.0, %v637
        %639 = vmatmul.bf16.gmra.mxu0 %v623
        %v640 = vpop.f32.mrf.mxu0
        %v641 = vadd.f32 0.0, %v640
        %v642 = vpop.f32.mrf.mxu0
        %v643 = vadd.f32 0.0, %v642
        %644 = vdwg.mxu0
        %vm645 = vcmask 64512
        %v646 = vsel %vm645, %v636, -inf
        %647 = vmax.xlane.f32.xlu0 %v646
        %v648 = vpop.xlane.xlu0 %647
        %v649 = vsel %vm645, %v638, -inf
        %650 = vmax.xlane.f32.xlu0 %v649
        %v651 = vpop.xlane.xlu0 %650
        %v652 = vsel %vm645, %v641, -inf
        %653 = vmax.xlane.f32.xlu0 %v652
        %v654 = vpop.xlane.xlu0 %653
        %v655 = vsel %vm645, %v643, -inf
        %656 = vmax.xlane.f32.xlu0 %v655
        %v657 = vpop.xlane.xlu0 %656
        %v658 = vsub.f32 -inf, %v648
        %v659 = vsub.f32 -inf, %v651
        %v660 = vsub.f32 -inf, %v654
        %v661 = vsub.f32 -inf, %v657
        %v662 = vmul.f32 %v658, 1.442695
        %v663 = vpow.pop %v662
        %v664 = vmul.f32 %v659, 1.442695
        %v665 = vpow.pop %v664
        %v666 = vmul.f32 %v660, 1.442695
        %v667 = vpow.pop %v666
        %v668 = vmul.f32 %v661, 1.442695
        %v669 = vpow.pop %v668
        %v670 = vsub.f32 %v636, %v648
        %v671 = vsub.f32 %v638, %v651
        %v672 = vsub.f32 %v641, %v654
        %v673 = vsub.f32 %v643, %v657
        %v674 = vmul.f32 %v670, 1.442695
        %v675 = vpow.pop %v674
        %v676 = vmul.f32 %v671, 1.442695
        %v677 = vpow.pop %v676
        %v678 = vmul.f32 %v672, 1.442695
        %v679 = vpow.pop %v678
        %v680 = vmul.f32 %v673, 1.442695
        %v681 = vpow.pop %v680
        %v682 = vmul.f32 %v663, 0.0
        %v683 = vmul.f32 %v665, 0.0
        %v684 = vmul.f32 %v667, 0.0
        %v685 = vmul.f32 %v669, 0.0
        %v686 = vsel %vm645, %v675, 0.0
        %687 = vadd.xlane.f32.xlu0 %v686
        %v688 = vpop.xlane.xlu0 %687
        %v689 = vsel %vm645, %v677, 0.0
        %690 = vadd.xlane.f32.xlu0 %v689
        %v691 = vpop.xlane.xlu0 %690
        %v692 = vsel %vm645, %v679, 0.0
        %693 = vadd.xlane.f32.xlu0 %v692
        %v694 = vpop.xlane.xlu0 %693
        %v695 = vsel %vm645, %v681, 0.0
        %696 = vadd.xlane.f32.xlu0 %v695
        %v697 = vpop.xlane.xlu0 %696
        %v698 = vadd.f32 %v682, %v688
        %v699 = vadd.f32 %v683, %v691
        %v700 = vadd.f32 %v684, %v694
        %v701 = vadd.f32 %v685, %v697
        %v702 = vpack.c.bf16 %v677, %v675
        %v703 = vpack.c.bf16 %v681, %v679
        %v705 = vsel %vm645, %v702, 0
        %v708 = vsel %vm645, %v703, 0
        %vm710 = vcmask 1043456
        %v712 = vsel %vm710, %v613, 0
        %714 = vmatpush.bf16.msra.mxu0 0
        %715 = vmatpush.bf16.msra.mxu0 0
        %716 = vmatpush.bf16.msra.mxu0 0
        %717 = vmatpush.bf16.msra.mxu0 0
        %718 = vmatpush.bf16.msra.mxu0 0
        %719 = vmatpush.bf16.msra.mxu0 0
        %720 = vmatpush.bf16.msra.mxu0 0
        %721 = vmatpush.bf16.msra.mxu0 %v712
        %722 = vmatmul.bf16.gmra.mxu0 %v705
        %v723 = vpop.f32.mrf.mxu0
        %v724 = vadd.f32 0.0, %v723
        %v725 = vpop.f32.mrf.mxu0
        %v726 = vadd.f32 0.0, %v725
        %727 = vmatmul.bf16.gmra.mxu0 %v708
        %v728 = vpop.f32.mrf.mxu0
        %v729 = vadd.f32 0.0, %v728
        %v730 = vpop.f32.mrf.mxu0
        %v731 = vadd.f32 0.0, %v730
        %732 = vdwg.mxu0
        %v733 = vadd.f32 %v682, %v724
        %v734 = vadd.f32 %v683, %v726
        %v735 = vadd.f32 %v684, %v729
        %v736 = vadd.f32 %v685, %v731
        %v737 = vrcp.pop %v698
        %v738 = vrcp.pop %v699
        %v739 = vrcp.pop %v700
        %v740 = vrcp.pop %v701
        %v741 = vmul.f32 %v733, %v737
        %v742 = vmul.f32 %v734, %v738
        %v743 = vmul.f32 %v735, %v739
        %v744 = vmul.f32 %v736, %v740
        %v745 = vpack.c.bf16 %v741, %v741
        %v746 = vpack.c.bf16 %v742, %v742
        %v747 = vpack.c.bf16 %v743, %v743
        %v748 = vpack.c.bf16 %v744, %v744
        %749 = vst [vmem:[#allocation5] sm:$0xf] %v745
        %750 = vst [vmem:[#allocation5 + $0x4] sm:$0xf] %v746
        %751 = vst [vmem:[#allocation5 + $0x8] sm:$0xf] %v747
        %752 = vst [vmem:[#allocation5 + $0xc] sm:$0xf] %v748
        %v753 = vld [vmem:[#allocation5] sm:$0xff]
        %v754 = vld [vmem:[#allocation5 + $0x8] sm:$0xff]
        %v755 = vld [vmem:[%s8] sm:$0xf]
        %v756 = vld [vmem:[%s8 + $0x4] sm:$0xf]
        %v757 = vld [vmem:[%s8 + $0x8] sm:$0xf]
        %v758 = vld [vmem:[%s8 + $0xc] sm:$0xf]
        %v759 = vld [vmem:[%s8 + $0x10] sm:$0xf]
        %v760 = vld [vmem:[%s8 + $0x14] sm:$0xf]
        %v761 = vld [vmem:[%s8 + $0x18] sm:$0xf]
        %v762 = vld [vmem:[%s8 + $0x1c] sm:$0xf]
        %v763 = vld [vmem:[%s8 + $0x20] sm:$0xf]
        %v764 = vld [vmem:[%s8 + $0x24] sm:$0xf]
        %v765 = vld [vmem:[%s8 + $0x28] sm:$0xf]
        %v766 = vld [vmem:[%s8 + $0x2c] sm:$0xf]
        %v767 = vld [vmem:[%s8 + $0x30] sm:$0xf]
        %v768 = vld [vmem:[%s8 + $0x34] sm:$0xf]
        %v769 = vld [vmem:[%s8 + $0x38] sm:$0xf]
        %v770 = vld [vmem:[%s8 + $0x3c] sm:$0xf]
        %v771 = vld [vmem:[%s8 + $0x40] sm:$0xf]
        %v772 = vld [vmem:[%s8 + $0x44] sm:$0xf]
        %v773 = vld [vmem:[%s8 + $0x48] sm:$0xf]
        %v774 = vld [vmem:[%s8 + $0x4c] sm:$0xf]
        %v775 = vld [vmem:[%s8 + $0x50] sm:$0xf]
        %v776 = vld [vmem:[%s8 + $0x54] sm:$0xf]
        %v777 = vld [vmem:[%s8 + $0x58] sm:$0xf]
        %v778 = vld [vmem:[%s8 + $0x5c] sm:$0xf]
        %v779 = vld [vmem:[%s8 + $0x60] sm:$0xf]
        %v780 = vld [vmem:[%s8 + $0x64] sm:$0xf]
        %v781 = vld [vmem:[%s8 + $0x68] sm:$0xf]
        %v782 = vld [vmem:[%s8 + $0x6c] sm:$0xf]
        %v783 = vld [vmem:[%s8 + $0x70] sm:$0xf]
        %v784 = vld [vmem:[%s8 + $0x74] sm:$0xf]
        %v785 = vld [vmem:[%s8 + $0x78] sm:$0xf]
        %v786 = vld [vmem:[%s8 + $0x7c] sm:$0xf]
        %v787 = vld [vmem:[%s8 + $0x80] sm:$0xf]
        %v788 = vld [vmem:[%s8 + $0x84] sm:$0xf]
        %v789 = vld [vmem:[%s8 + $0x88] sm:$0xf]
        %v790 = vld [vmem:[%s8 + $0x8c] sm:$0xf]
        %v791 = vld [vmem:[%s8 + $0x90] sm:$0xf]
        %v792 = vld [vmem:[%s8 + $0x94] sm:$0xf]
        %v793 = vld [vmem:[%s8 + $0x98] sm:$0xf]
        %v794 = vld [vmem:[%s8 + $0x9c] sm:$0xf]
        %v795 = vld [vmem:[%s8 + $0xa0] sm:$0xf]
        %v796 = vld [vmem:[%s8 + $0xa4] sm:$0xf]
        %v797 = vld [vmem:[%s8 + $0xa8] sm:$0xf]
        %v798 = vld [vmem:[%s8 + $0xac] sm:$0xf]
        %v799 = vld [vmem:[%s8 + $0xb0] sm:$0xf]
        %v800 = vld [vmem:[%s8 + $0xb4] sm:$0xf]
        %v801 = vld [vmem:[%s8 + $0xb8] sm:$0xf]
        %v802 = vld [vmem:[%s8 + $0xbc] sm:$0xf]
        %v803 = vld [vmem:[%s8 + $0xc0] sm:$0xf]
        %v804 = vld [vmem:[%s8 + $0xc4] sm:$0xf]
        %v805 = vld [vmem:[%s8 + $0xc8] sm:$0xf]
        %v806 = vld [vmem:[%s8 + $0xcc] sm:$0xf]
        %v807 = vld [vmem:[%s8 + $0xd0] sm:$0xf]
        %v808 = vld [vmem:[%s8 + $0xd4] sm:$0xf]
        %v809 = vld [vmem:[%s8 + $0xd8] sm:$0xf]
        %v810 = vld [vmem:[%s8 + $0xdc] sm:$0xf]
        %v811 = vld [vmem:[%s8 + $0xe0] sm:$0xf]
        %v812 = vld [vmem:[%s8 + $0xe4] sm:$0xf]
        %v813 = vld [vmem:[%s8 + $0xe8] sm:$0xf]
        %v814 = vld [vmem:[%s8 + $0xec] sm:$0xf]
        %v815 = vld [vmem:[%s8 + $0xf0] sm:$0xf]
        %v816 = vld [vmem:[%s8 + $0xf4] sm:$0xf]
        %v817 = vld [vmem:[%s8 + $0xf8] sm:$0xf]
        %v818 = vld [vmem:[%s8 + $0xfc] sm:$0xf]
        %v819 = vld [vmem:[%s9] sm:$0x1]
        %v821 = vperm.slane %v819, 0
        %v825 = vunpack.c.l.b16 %v753
        %v826 = vunpack.c.h.b16 %v753
        %v827 = vunpack.c.l.b16 %v754
        %v828 = vunpack.c.h.b16 %v754
        %v829 = vpack.c.b16 %v825, %v825
        %v830 = vpack.c.b16 %v826, %v826
        %v831 = vpack.c.b16 %v827, %v827
        %v832 = vpack.c.b16 %v828, %v828
        %v901 = vunpack.c.l.b16 %v755
        %v902 = vunpack.c.l.b16 %v756
        %v903 = vunpack.c.l.b16 %v757
        %v904 = vunpack.c.l.b16 %v758
        %v905 = vunpack.c.l.b16 %v759
        %v906 = vunpack.c.l.b16 %v760
        %v907 = vunpack.c.l.b16 %v761
        %v908 = vunpack.c.l.b16 %v762
        %v909 = vunpack.c.l.b16 %v763
        %v910 = vunpack.c.l.b16 %v764
        %v911 = vunpack.c.l.b16 %v765
        %v912 = vunpack.c.l.b16 %v766
        %v913 = vunpack.c.l.b16 %v767
        %v914 = vunpack.c.l.b16 %v768
        %v915 = vunpack.c.l.b16 %v769
        %v916 = vunpack.c.l.b16 %v770
        %v917 = vunpack.c.l.b16 %v771
        %v918 = vunpack.c.l.b16 %v772
        %v919 = vunpack.c.l.b16 %v773
        %v920 = vunpack.c.l.b16 %v774
        %v921 = vunpack.c.l.b16 %v775
        %v922 = vunpack.c.l.b16 %v776
        %v923 = vunpack.c.l.b16 %v777
        %v924 = vunpack.c.l.b16 %v778
        %v925 = vunpack.c.l.b16 %v779
        %v926 = vunpack.c.l.b16 %v780
        %v927 = vunpack.c.l.b16 %v781
        %v928 = vunpack.c.l.b16 %v782
        %v929 = vunpack.c.l.b16 %v783
        %v930 = vunpack.c.l.b16 %v784
        %v931 = vunpack.c.l.b16 %v785
        %v932 = vunpack.c.l.b16 %v786
        %v933 = vunpack.c.l.b16 %v787
        %v934 = vunpack.c.l.b16 %v788
        %v935 = vunpack.c.l.b16 %v789
        %v936 = vunpack.c.l.b16 %v790
        %v937 = vunpack.c.l.b16 %v791
        %v938 = vunpack.c.l.b16 %v792
        %v939 = vunpack.c.l.b16 %v793
        %v940 = vunpack.c.l.b16 %v794
        %v941 = vunpack.c.l.b16 %v795
        %v942 = vunpack.c.l.b16 %v796
        %v943 = vunpack.c.l.b16 %v797
        %v944 = vunpack.c.l.b16 %v798
        %v945 = vunpack.c.l.b16 %v799
        %v946 = vunpack.c.l.b16 %v800
        %v947 = vunpack.c.l.b16 %v801
        %v948 = vunpack.c.l.b16 %v802
        %v949 = vunpack.c.l.b16 %v803
        %v950 = vunpack.c.l.b16 %v804
        %v951 = vunpack.c.l.b16 %v805
        %v952 = vunpack.c.l.b16 %v806
        %v953 = vunpack.c.l.b16 %v807
        %v954 = vunpack.c.l.b16 %v808
        %v955 = vunpack.c.l.b16 %v809
        %v956 = vunpack.c.l.b16 %v810
        %v957 = vunpack.c.l.b16 %v811
        %v958 = vunpack.c.l.b16 %v812
        %v959 = vunpack.c.l.b16 %v813
        %v960 = vunpack.c.l.b16 %v814
        %v961 = vunpack.c.l.b16 %v815
        %v962 = vunpack.c.l.b16 %v816
        %v963 = vunpack.c.l.b16 %v817
        %v964 = vunpack.c.l.b16 %v818
        %v965 = vpack.c.b16 %v902, %v901
        %v966 = vpack.c.b16 %v904, %v903
        %v967 = vpack.c.b16 %v906, %v905
        %v968 = vpack.c.b16 %v908, %v907
        %v969 = vpack.c.b16 %v910, %v909
        %v970 = vpack.c.b16 %v912, %v911
        %v971 = vpack.c.b16 %v914, %v913
        %v972 = vpack.c.b16 %v916, %v915
        %v973 = vpack.c.b16 %v918, %v917
        %v974 = vpack.c.b16 %v920, %v919
        %v975 = vpack.c.b16 %v922, %v921
        %v976 = vpack.c.b16 %v924, %v923
        %v977 = vpack.c.b16 %v926, %v925
        %v978 = vpack.c.b16 %v928, %v927
        %v979 = vpack.c.b16 %v930, %v929
        %v980 = vpack.c.b16 %v932, %v931
        %v981 = vpack.c.b16 %v934, %v933
        %v982 = vpack.c.b16 %v936, %v935
        %v983 = vpack.c.b16 %v938, %v937
        %v984 = vpack.c.b16 %v940, %v939
        %v985 = vpack.c.b16 %v942, %v941
        %v986 = vpack.c.b16 %v944, %v943
        %v987 = vpack.c.b16 %v946, %v945
        %v988 = vpack.c.b16 %v948, %v947
        %v989 = vpack.c.b16 %v950, %v949
        %v990 = vpack.c.b16 %v952, %v951
        %v991 = vpack.c.b16 %v954, %v953
        %v992 = vpack.c.b16 %v956, %v955
        %v993 = vpack.c.b16 %v958, %v957
        %v994 = vpack.c.b16 %v960, %v959
        %v995 = vpack.c.b16 %v962, %v961
        %v996 = vpack.c.b16 %v964, %v963
        %1029 = vmatpush.bf16.msra.mxu0 %v972
        %1030 = vmatpush.bf16.msra.mxu0 %v971
        %1031 = vmatpush.bf16.msra.mxu0 %v970
        %1032 = vmatpush.bf16.msra.mxu0 %v969
        %1033 = vmatpush.bf16.msra.mxu0 %v968
        %1034 = vmatpush.bf16.msra.mxu0 %v967
        %1035 = vmatpush.bf16.msra.mxu0 %v966
        %1036 = vmatpush.bf16.msra.mxu0 %v965
        %1037 = vmatmul.bf16.gmra.mxu0 %v829
        %v1038 = vpop.f32.mrf.mxu0
        %v1039 = vadd.f32 %v821, %v1038
        %v1040 = vpop.f32.mrf.mxu0
        %1041 = vdwg.mxu0
        %1042 = vmatpush.bf16.msra.mxu0 %v980
        %1043 = vmatpush.bf16.msra.mxu0 %v979
        %1044 = vmatpush.bf16.msra.mxu0 %v978
        %1045 = vmatpush.bf16.msra.mxu0 %v977
        %1046 = vmatpush.bf16.msra.mxu0 %v976
        %1047 = vmatpush.bf16.msra.mxu0 %v975
        %1048 = vmatpush.bf16.msra.mxu0 %v974
        %1049 = vmatpush.bf16.msra.mxu0 %v973
        %1050 = vmatmul.bf16.gmra.mxu0 %v830
        %v1051 = vpop.f32.mrf.mxu0
        %v1052 = vadd.f32 %v1039, %v1051
        %v1053 = vpop.f32.mrf.mxu0
        %1054 = vdwg.mxu0
        %1055 = vmatpush.bf16.msra.mxu0 %v988
        %1056 = vmatpush.bf16.msra.mxu0 %v987
        %1057 = vmatpush.bf16.msra.mxu0 %v986
        %1058 = vmatpush.bf16.msra.mxu0 %v985
        %1059 = vmatpush.bf16.msra.mxu0 %v984
        %1060 = vmatpush.bf16.msra.mxu0 %v983
        %1061 = vmatpush.bf16.msra.mxu0 %v982
        %1062 = vmatpush.bf16.msra.mxu0 %v981
        %1063 = vmatmul.bf16.gmra.mxu0 %v831
        %v1064 = vpop.f32.mrf.mxu0
        %v1065 = vadd.f32 %v1052, %v1064
        %v1066 = vpop.f32.mrf.mxu0
        %1067 = vdwg.mxu0
        %1068 = vmatpush.bf16.msra.mxu0 %v996
        %1069 = vmatpush.bf16.msra.mxu0 %v995
        %1070 = vmatpush.bf16.msra.mxu0 %v994
        %1071 = vmatpush.bf16.msra.mxu0 %v993
        %1072 = vmatpush.bf16.msra.mxu0 %v992
        %1073 = vmatpush.bf16.msra.mxu0 %v991
        %1074 = vmatpush.bf16.msra.mxu0 %v990
        %1075 = vmatpush.bf16.msra.mxu0 %v989
        %1076 = vmatmul.bf16.gmra.mxu0 %v832
        %v1077 = vpop.f32.mrf.mxu0
        %v1078 = vadd.f32 %v1065, %v1077
        %v1079 = vpop.f32.mrf.mxu0
        %1080 = vdwg.mxu0
        %1081 = vst.msk [vmem:[%s385] sm:$0xff] %vm536, %v1078
        %s1082 = sand.u32 %s268, 1
        %s1083 = scalar_lea.sflag [#allocation7], %s1082
        %s1084 = sand.u32 %s268, 1
        %s1085 = smul.addr %s1084, 8
        %s1086 = scalar_lea.vmem [#allocation6], %s1085
        // Predicated region
        $region65: #{tpu_custom_call.1} parent=59 // pred_check
          %p1087 = pneg %p278
        $region66: #{tpu_custom_call.1} parent=59 // pred_check_branch
          %1089 = sbr.rel (%p1087) target = $region68
        $region67: #{tpu_custom_call.1} parent=59 // pred_region
          %1091 = vsyncadd %s1083, 0
          %s1092 = sadd.s32 %s29, %s28
          %s1093 = smul.addr %s1092, 8
          %s1094 = scalar_lea.hbm %s10, %s1093
          %s1096 = sshll.u32 %s1086, 4
          %s1097 = int_to_ptr.vmem [resolvable:$true] %s1096
          %s1098 = sshll.u32 %s1094, 4
          %s1099 = int_to_ptr.hbm [resolvable:$true] %s1098
          %1101 = dma.vmem_to_hbm [thread:$0]  %s1097, 128, %s1099, %s1083
        $region68: #{tpu_custom_call.1} parent=59 // pred_fallthru
          _
      $region60: #{tpu_custom_call.1} parent=5 // pred_fallthru
        _
      %p1102 = scmp.le.s32.totalorder 2, %s19
      // Predicated region
      $region69: #{tpu_custom_call.1} parent=5 // pred_check
        %p1103 = pneg %p1102
      $region70: #{tpu_custom_call.1} parent=5 // pred_check_branch
        %1105 = sbr.rel (%p1103) target = $region72
      $region71: #{tpu_custom_call.1} parent=5 // pred_region
        %s1106 = ssub.s32 %s19, 2
        // Predicated region
        $region73: #{tpu_custom_call.1} parent=71 // pred_check
          %p1107 = pneg %p284
        $region74: #{tpu_custom_call.1} parent=71 // pred_check_branch
          %1109 = sbr.rel (%p1107) target = $region76
        $region75: #{tpu_custom_call.1} parent=71 // pred_region
          %s1110 = sand.u32 %s269, 1
          %s1111 = scalar_lea.sflag [#allocation7], %s1110
          %s1112 = sand.u32 %s269, 1
          %s1113 = smul.addr %s1112, 8
          %s1114 = scalar_lea.vmem [#allocation6], %s1113
          %1116 = dma.done %s1111, 128
        $region76: #{tpu_custom_call.1} parent=71 // pred_fallthru
          _
      $region72: #{tpu_custom_call.1} parent=5 // pred_fallthru
        _
    $region6: #{tpu_custom_call.1} parent=1 // loop_footer
      %s23 = sadd.s32 1, %s19
    $region7: #{tpu_custom_call.1} parent=1 // loop_footer_branch
      %18 = sbr.rel target = $region3
    $region8: #{tpu_custom_call.1} parent=1 // loop_exit
      _
    %1117 = vsyncpa [#allocation7], 1
    %s1118 = scalar_lea.sflag [#allocation7], 1
    %1119 = vsyncpa %s1118, 1

</llo_original>
